<compile_context>
chip_gen: v6e
topology: v6e:2x2x1
jax: 0.10.0
libtpu: 0.0.40
codegen_flags: <defaults>
</compile_context>

<pallas_src>
import math

import jax
import jax.numpy as jnp
from jax.experimental import pallas as pl
from jax.experimental.pallas import tpu as pltpu


# Padded feature sizes (lane multiples of 128).
IN0 = 256          # 256 already a multiple of 128
H1_PAD = 512       # 400 -> 512
H2_PAD = 640       # 600 -> 640
OUT_PAD = 128      # 5   -> 128
OUT_REAL = 5


# ---------------------------------------------------------------------------
# Kernel: full 3-layer MLP in one grid-less pallas_call. All operands are tiny
# (<1 MB total), so everything sits in VMEM as full blocks.
# Weights arrive pre-transposed to (in, out), z-folded, zero-padded, bf16.
# ---------------------------------------------------------------------------
def _net_kernel(x_ref,
                w1_ref, b1_ref,
                w2_ref, b2_ref,
                w3_ref, b3_ref,
                out_ref):
    x = x_ref[...]                                            # (B, 256) f32

    # --- fc1: (256 -> 512pad) + ReLU ---------------------------------------
    h1 = jnp.dot(x.astype(jnp.bfloat16), w1_ref[...],
                 preferred_element_type=jnp.float32) + b1_ref[...]
    h1 = jnp.maximum(h1, 0.0)                                 # (B, 512) f32

    # --- fc2: (512pad -> 640pad) + ReLU ------------------------------------
    h2 = jnp.dot(h1.astype(jnp.bfloat16), w2_ref[...],
                 preferred_element_type=jnp.float32) + b2_ref[...]
    h2 = jnp.maximum(h2, 0.0)                                 # (B, 640) f32

    # --- fc3: (640pad -> 128pad), no activation ----------------------------
    out = jnp.dot(h2.astype(jnp.bfloat16), w3_ref[...],
                  preferred_element_type=jnp.float32) + b3_ref[...]
    out_ref[...] = out.astype(out_ref.dtype)                  # (B, 128) f32


def net_forward(x_nchw, params):
    """Run the Net forward pass. x_nchw: (B, C, H, W) with C*H*W % 256 == 0."""
    x2d = x_nchw.reshape(-1, IN0).astype(jnp.float32)         # == torch x.view(-1, 256)
    batch = x2d.shape[0]

    (w1, b1, w2, b2, w3, b3) = params

    vmem = pl.BlockSpec(memory_space=pltpu.MemorySpace.VMEM)
    out_padded = pl.pallas_call(
        _net_kernel,
        out_shape=jax.ShapeDtypeStruct((batch, OUT_PAD), jnp.float32),
        in_specs=[vmem] * 7,
        out_specs=vmem,
    )(x2d, w1, b1, w2, b2, w3, b3)
    # Lane-dense (batch, 128) output store in the kernel; slice to the real 5
    # logits on the host side.
    return out_padded[:, :OUT_REAL]


# ---------------------------------------------------------------------------
# Deterministic parameter construction mirroring LinearGroupNJ.reset_parameters
#   z_mu      ~ N(1, 0.01)
#   weight_mu ~ N(0, 1/sqrt(in_features))
#   bias_mu   = 0
# The eval forward (x*z) @ W.T is rewritten as x @ (z[:,None] * W.T): z is
# folded into the pre-transposed weight, which is then zero-padded to lane
# multiples and stored as bf16. Bias stays f32.
# (logvar parameters only matter for the stochastic / KL paths, so omitted.)
# ---------------------------------------------------------------------------
def make_layer_params(key, in_features, out_features, pad_in, pad_out):
    k_z, k_w = jax.random.split(key)
    stdv = 1.0 / math.sqrt(in_features)
    z_mu = 1.0 + 0.01 * jax.random.normal(k_z, (in_features,), dtype=jnp.float32)
    w_mu = stdv * jax.random.normal(
        k_w, (out_features, in_features), dtype=jnp.float32)
    b_mu = jnp.zeros((out_features,), dtype=jnp.float32)

    # Fold z into the transposed weight: (in, out) scaled per input row.
    w_eff = jnp.transpose(w_mu) * z_mu[:, None]               # (in, out) f32

    # Zero-pad to lane-aligned shapes; padded rows/cols contribute nothing.
    w_pad = jnp.zeros((pad_in, pad_out), dtype=jnp.float32)
    w_pad = w_pad.at[:in_features, :out_features].set(w_eff)
    b_pad = jnp.zeros((1, pad_out), dtype=jnp.float32)
    b_pad = b_pad.at[0, :out_features].set(b_mu)

    return w_pad.astype(jnp.bfloat16), b_pad


def make_net_params(key):
    k1, k2, k3 = jax.random.split(key, 3)
    w1, b1 = make_layer_params(k1, 256, 400, IN0, H1_PAD)
    w2, b2 = make_layer_params(k2, 400, 600, H1_PAD, H2_PAD)
    w3, b3 = make_layer_params(k3, 600, 5, H2_PAD, OUT_PAD)
    return (w1, b1, w2, b2, w3, b3)


if __name__ == "__main__":
    root = jax.random.PRNGKey(0)
    k_params, k_x = jax.random.split(root)

    params = make_net_params(k_params)

    # NCHW input; 4*16*16 = 1024 -> view(-1, 256) gives batch 8 rows of 256.
    x = jax.random.normal(k_x, (2, 4, 16, 16), dtype=jnp.float32)

    out = net_forward(x, params)
    out = jax.block_until_ready(out)

    assert out.shape == (8, 5), out.shape
    assert jnp.all(jnp.isfinite(out))
    print("KERNEL_OK")
</pallas_src>

<mosaic_0001>
module attributes {stable_mosaic.version = 11 : i64} {
  func.func @_net_kernel(%arg0: memref<8x256xf32, #tpu.memory_space<vmem>>, %arg1: memref<256x512xbf16, #tpu.memory_space<vmem>>, %arg2: memref<1x512xf32, #tpu.memory_space<vmem>>, %arg3: memref<512x640xbf16, #tpu.memory_space<vmem>>, %arg4: memref<1x640xf32, #tpu.memory_space<vmem>>, %arg5: memref<640x128xbf16, #tpu.memory_space<vmem>>, %arg6: memref<1x128xf32, #tpu.memory_space<vmem>>, %arg7: memref<8x128xf32, #tpu.memory_space<vmem>>) attributes {dimension_semantics = [], scalar_prefetch = 0 : i64, scratch_operands = 0 : i64, tpu.core_type = #tpu.core_type<tc>} {
    %c0 = arith.constant 0 : index
    %c0_0 = arith.constant 0 : index
    %0 = vector.load %arg0[%c0, %c0_0] : memref<8x256xf32, #tpu.memory_space<vmem>>, vector<8x256xf32>
    %1 = arith.truncf %0 : vector<8x256xf32> to vector<8x256xbf16>
    %c0_1 = arith.constant 0 : index
    %c0_2 = arith.constant 0 : index
    %2 = vector.load %arg1[%c0_1, %c0_2] : memref<256x512xbf16, #tpu.memory_space<vmem>>, vector<256x512xbf16>
    %cst = arith.constant dense<0.000000e+00> : vector<8x512xf32>
    %3 = tpu.matmul %1, %2, %cst {dimension_numbers = #tpu.dot_dimension_numbers<[1], [0], [0], [1], [0, 0, 1, 1], [], []>} : vector<8x256xbf16>, vector<256x512xbf16>, vector<8x512xf32> -> vector<8x512xf32>
    %c0_3 = arith.constant 0 : index
    %c0_4 = arith.constant 0 : index
    %4 = vector.load %arg2[%c0_3, %c0_4] : memref<1x512xf32, #tpu.memory_space<vmem>>, vector<1x512xf32>
    %5 = vector.broadcast %4 : vector<1x512xf32> to vector<8x512xf32>
    %6 = arith.addf %3, %5 : vector<8x512xf32>
    %cst_5 = arith.constant 0.000000e+00 : f32
    %7 = vector.broadcast %cst_5 : f32 to vector<8x512xf32>
    %8 = arith.maximumf %6, %7 : vector<8x512xf32>
    %9 = arith.truncf %8 : vector<8x512xf32> to vector<8x512xbf16>
    %c0_6 = arith.constant 0 : index
    %c0_7 = arith.constant 0 : index
    %10 = vector.load %arg3[%c0_6, %c0_7] : memref<512x640xbf16, #tpu.memory_space<vmem>>, vector<512x640xbf16>
    %cst_8 = arith.constant dense<0.000000e+00> : vector<8x640xf32>
    %11 = tpu.matmul %9, %10, %cst_8 {dimension_numbers = #tpu.dot_dimension_numbers<[1], [0], [0], [1], [0, 0, 1, 1], [], []>} : vector<8x512xbf16>, vector<512x640xbf16>, vector<8x640xf32> -> vector<8x640xf32>
    %c0_9 = arith.constant 0 : index
    %c0_10 = arith.constant 0 : index
    %12 = vector.load %arg4[%c0_9, %c0_10] : memref<1x640xf32, #tpu.memory_space<vmem>>, vector<1x640xf32>
    %13 = vector.broadcast %12 : vector<1x640xf32> to vector<8x640xf32>
    %14 = arith.addf %11, %13 : vector<8x640xf32>
    %cst_11 = arith.constant 0.000000e+00 : f32
    %15 = vector.broadcast %cst_11 : f32 to vector<8x640xf32>
    %16 = arith.maximumf %14, %15 : vector<8x640xf32>
    %17 = arith.truncf %16 : vector<8x640xf32> to vector<8x640xbf16>
    %c0_12 = arith.constant 0 : index
    %c0_13 = arith.constant 0 : index
    %18 = vector.load %arg5[%c0_12, %c0_13] : memref<640x128xbf16, #tpu.memory_space<vmem>>, vector<640x128xbf16>
    %cst_14 = arith.constant dense<0.000000e+00> : vector<8x128xf32>
    %19 = tpu.matmul %17, %18, %cst_14 {dimension_numbers = #tpu.dot_dimension_numbers<[1], [0], [0], [1], [0, 0, 1, 1], [], []>} : vector<8x640xbf16>, vector<640x128xbf16>, vector<8x128xf32> -> vector<8x128xf32>
    %c0_15 = arith.constant 0 : index
    %c0_16 = arith.constant 0 : index
    %20 = vector.load %arg6[%c0_15, %c0_16] : memref<1x128xf32, #tpu.memory_space<vmem>>, vector<1x128xf32>
    %21 = vector.broadcast %20 : vector<1x128xf32> to vector<8x128xf32>
    %22 = arith.addf %19, %21 : vector<8x128xf32>
    %c0_17 = arith.constant 0 : index
    %c0_18 = arith.constant 0 : index
    %23 = vector.load %arg7[%c0_17, %c0_18] : memref<8x128xf32, #tpu.memory_space<vmem>>, vector<8x128xf32>
    tpu.vector_store %arg7[%c0_17, %c0_18], %22 {strides = array<i32>} : memref<8x128xf32, #tpu.memory_space<vmem>>, vector<8x128xf32>,
    return
  }
}

</mosaic_0001>

<llo_original>
// kernel: tpu_custom_call.1
$region0: #{tpu_custom_call.1}
  #allocation0 [shape = 'u32[]', space=smem, size = 0x4, offset = 0x4, fixed_abs, tag = 'smem constant byte address 0x4 - core index']
  #allocation1 [shape = 'u32[144,128]{1,0:T(1,128)}', space=vmem, size = 0x12000, scoped, tag = 'internal scratch']
  %s0 = inlined_call_operand.hbm [shape: f32[8,256], index: 0, kind: input, shape index: {}]
  %s1 = inlined_call_operand.hbm [shape: bf16[256,512], index: 1, kind: input, shape index: {}]
  %s2 = inlined_call_operand.hbm [shape: f32[1,512], index: 2, kind: input, shape index: {}]
  %s3 = inlined_call_operand.hbm [shape: bf16[512,640], index: 3, kind: input, shape index: {}]
  %s4 = inlined_call_operand.vmem [shape: f32[1,640], index: 4, kind: input, shape index: {}]
  %s5 = inlined_call_operand.hbm [shape: bf16[640,128], index: 5, kind: input, shape index: {}]
  %s6 = inlined_call_operand.vmem [shape: f32[1,128], index: 6, kind: input, shape index: {}]
  %s7 = inlined_call_operand.hbm [shape: f32[8,128], index: 7, kind: output, shape index: {}]
  %s8 = sld [smem:[#allocation0]]
  $region58: #{tpu_custom_call.1} parent=0
    _
  %s10 = ssub.s32 1, %s8
  %s11 = scalar_select 0, %s10, %s8
  $region1: #{tpu_custom_call.1} parent=0
    #allocation2 [shape = 'u8[8192]{0}', space=vmem, size = 0x2000, scoped, tag = 'input window, operand 0, single buffered']
    #allocation3 [shape = 's32[1]{0}', space=sflag, size = 0x4, scoped, tag = 'scoped memory for tpu_custom_call.1']
    #allocation4 [shape = 's32[1]{0}', space=sflag, size = 0x4, scoped, tag = 'scoped memory for tpu_custom_call.1']
    #allocation5 [shape = 'u8[262144]{0}', space=vmem, size = 0x40000, scoped, tag = 'input window, operand 1, single buffered']
    #allocation6 [shape = 's32[1]{0}', space=sflag, size = 0x4, scoped, tag = 'scoped memory for tpu_custom_call.1']
    #allocation7 [shape = 'u8[2048]{0}', space=vmem, size = 0x800, scoped, tag = 'input window, operand 2, single buffered']
    #allocation8 [shape = 'u8[655360]{0}', space=vmem, size = 0xa0000, scoped, tag = 'input window, operand 3, single buffered']
    #allocation9 [shape = 's32[1]{0}', space=sflag, size = 0x4, scoped, tag = 'scoped memory for tpu_custom_call.1']
    #allocation10 [shape = 'u8[163840]{0}', space=vmem, size = 0x28000, scoped, tag = 'input window, operand 5, single buffered']
    #allocation11 [shape = 'u8[4096]{0}', space=vmem, size = 0x1000, scoped, tag = 'output window, operand 0, single buffered']
    %12 = vsyncpa [#allocation3], 0
    %13 = vsyncpa [#allocation6], 0
    %14 = vsyncpa [#allocation9], 0
    %15 = vsyncpa [#allocation4], 0
    // Predicated region
    $region2: #{tpu_custom_call.1} parent=1 // pred_check
      _
    $region3: #{tpu_custom_call.1} parent=1 // pred_check_branch
      %17 = sbr.rel (0) target = $region5
    $region4: #{tpu_custom_call.1} parent=1 // pred_region
      %s19 = ssub.s32 256, 256
      %20 = vsyncadd [#allocation3], %s19
      %s22 = sshll.u32 [#allocation2], 4
      %s23 = int_to_ptr.vmem [resolvable:$true] %s22
      %25 = dma.hbm_to_vmem [thread:$0]  %s0, 256, %s23, [#allocation3]
    $region5: #{tpu_custom_call.1} parent=1 // pred_fallthru
      _
    // Predicated region
    $region6: #{tpu_custom_call.1} parent=1 // pred_check
      _
    $region7: #{tpu_custom_call.1} parent=1 // pred_check_branch
      %27 = sbr.rel (0) target = $region9
    $region8: #{tpu_custom_call.1} parent=1 // pred_region
      %s29 = ssub.s32 8192, 8192
      %30 = vsyncadd [#allocation6], %s29
      %s31 = sshll.u32 [#allocation5], 4
      %s32 = int_to_ptr.vmem [resolvable:$true] %s31
      %37 = dma.hbm_to_vmem [thread:$0]  %s1, 8192, %s32, [#allocation6], 256, 256, 16
    $region9: #{tpu_custom_call.1} parent=1 // pred_fallthru
      _
    // Predicated region
    $region10: #{tpu_custom_call.1} parent=1 // pred_check
      _
    $region11: #{tpu_custom_call.1} parent=1 // pred_check_branch
      %39 = sbr.rel (0) target = $region13
    $region12: #{tpu_custom_call.1} parent=1 // pred_region
      %s41 = ssub.s32 64, 64
      %42 = vsyncadd [#allocation6], %s41
      %s44 = sshll.u32 [#allocation7], 4
      %s45 = int_to_ptr.vmem [resolvable:$true] %s44
      %47 = dma.hbm_to_vmem [thread:$0]  %s2, 64, %s45, [#allocation6]
    $region13: #{tpu_custom_call.1} parent=1 // pred_fallthru
      _
    // Predicated region
    $region14: #{tpu_custom_call.1} parent=1 // pred_check
      _
    $region15: #{tpu_custom_call.1} parent=1 // pred_check_branch
      %49 = sbr.rel (0) target = $region17
    $region16: #{tpu_custom_call.1} parent=1 // pred_region
      %s51 = ssub.s32 20480, 20480
      %52 = vsyncadd [#allocation9], %s51
      %s53 = sshll.u32 [#allocation8], 4
      %s54 = int_to_ptr.vmem [resolvable:$true] %s53
      %59 = dma.hbm_to_vmem [thread:$0]  %s3, 20480, %s54, [#allocation9], 320, 320, 20
    $region17: #{tpu_custom_call.1} parent=1 // pred_fallthru
      _
    // Predicated region
    $region18: #{tpu_custom_call.1} parent=1 // pred_check
      _
    $region19: #{tpu_custom_call.1} parent=1 // pred_check_branch
      %61 = sbr.rel (0) target = $region21
    $region20: #{tpu_custom_call.1} parent=1 // pred_region
      _
    $region21: #{tpu_custom_call.1} parent=1 // pred_fallthru
      _
    // Predicated region
    $region22: #{tpu_custom_call.1} parent=1 // pred_check
      _
    $region23: #{tpu_custom_call.1} parent=1 // pred_check_branch
      %63 = sbr.rel (0) target = $region25
    $region24: #{tpu_custom_call.1} parent=1 // pred_region
      %s65 = ssub.s32 5120, 5120
      %66 = vsyncadd [#allocation9], %s65
      %s67 = sshll.u32 [#allocation10], 4
      %s68 = int_to_ptr.vmem [resolvable:$true] %s67
      %73 = dma.hbm_to_vmem [thread:$0]  %s5, 5120, %s68, [#allocation9], 64, 64, 4
    $region25: #{tpu_custom_call.1} parent=1 // pred_fallthru
      _
    // Predicated region
    $region26: #{tpu_custom_call.1} parent=1 // pred_check
      _
    $region27: #{tpu_custom_call.1} parent=1 // pred_check_branch
      %75 = sbr.rel (0) target = $region29
    $region28: #{tpu_custom_call.1} parent=1 // pred_region
      _
    $region29: #{tpu_custom_call.1} parent=1 // pred_fallthru
      _
    // Predicated region
    $region30: #{tpu_custom_call.1} parent=1 // pred_check
      _
    $region31: #{tpu_custom_call.1} parent=1 // pred_check_branch
      %77 = sbr.rel (0) target = $region33
    $region32: #{tpu_custom_call.1} parent=1 // pred_region
      %78 = dma.done [#allocation3], 256
    $region33: #{tpu_custom_call.1} parent=1 // pred_fallthru
      _
    // Predicated region
    $region34: #{tpu_custom_call.1} parent=1 // pred_check
      _
    $region35: #{tpu_custom_call.1} parent=1 // pred_check_branch
      %80 = sbr.rel (0) target = $region37
    $region36: #{tpu_custom_call.1} parent=1 // pred_region
      %81 = dma.done [#allocation6], 8192
    $region37: #{tpu_custom_call.1} parent=1 // pred_fallthru
      _
    // Predicated region
    $region38: #{tpu_custom_call.1} parent=1 // pred_check
      _
    $region39: #{tpu_custom_call.1} parent=1 // pred_check_branch
      %83 = sbr.rel (0) target = $region41
    $region40: #{tpu_custom_call.1} parent=1 // pred_region
      %84 = dma.done [#allocation6], 64
    $region41: #{tpu_custom_call.1} parent=1 // pred_fallthru
      _
    // Predicated region
    $region42: #{tpu_custom_call.1} parent=1 // pred_check
      _
    $region43: #{tpu_custom_call.1} parent=1 // pred_check_branch
      %86 = sbr.rel (0) target = $region45
    $region44: #{tpu_custom_call.1} parent=1 // pred_region
      %87 = dma.done [#allocation9], 20480
    $region45: #{tpu_custom_call.1} parent=1 // pred_fallthru
      _
    // Predicated region
    $region46: #{tpu_custom_call.1} parent=1 // pred_check
      _
    $region47: #{tpu_custom_call.1} parent=1 // pred_check_branch
      %89 = sbr.rel (0) target = $region49
    $region48: #{tpu_custom_call.1} parent=1 // pred_region
      %90 = dma.done [#allocation9], 5120
    $region49: #{tpu_custom_call.1} parent=1 // pred_fallthru
      _
    %v92 = vld [vmem:[#allocation2] sm:$0xff]
    %v93 = vld [vmem:[#allocation2 + $0x8] sm:$0xff]
    %v94 = vpack.c.bf16 %v92, %v92
    %v95 = vpack.c.bf16 %v93, %v93
    %v96 = vld [vmem:[#allocation5] sm:$0xff]
    %v97 = vld [vmem:[#allocation5 + $0x8] sm:$0xff]
    %v98 = vld [vmem:[#allocation5 + $0x10] sm:$0xff]
    %v99 = vld [vmem:[#allocation5 + $0x18] sm:$0xff]
    %v100 = vld [vmem:[#allocation5 + $0x20] sm:$0xff]
    %v101 = vld [vmem:[#allocation5 + $0x28] sm:$0xff]
    %v102 = vld [vmem:[#allocation5 + $0x30] sm:$0xff]
    %v103 = vld [vmem:[#allocation5 + $0x38] sm:$0xff]
    %v104 = vld [vmem:[#allocation5 + $0x40] sm:$0xff]
    %v105 = vld [vmem:[#allocation5 + $0x48] sm:$0xff]
    %v106 = vld [vmem:[#allocation5 + $0x50] sm:$0xff]
    %v107 = vld [vmem:[#allocation5 + $0x58] sm:$0xff]
    %v108 = vld [vmem:[#allocation5 + $0x60] sm:$0xff]
    %v109 = vld [vmem:[#allocation5 + $0x68] sm:$0xff]
    %v110 = vld [vmem:[#allocation5 + $0x70] sm:$0xff]
    %v111 = vld [vmem:[#allocation5 + $0x78] sm:$0xff]
    %v112 = vld [vmem:[#allocation5 + $0x80] sm:$0xff]
    %v113 = vld [vmem:[#allocation5 + $0x88] sm:$0xff]
    %v114 = vld [vmem:[#allocation5 + $0x90] sm:$0xff]
    %v115 = vld [vmem:[#allocation5 + $0x98] sm:$0xff]
    %v116 = vld [vmem:[#allocation5 + $0xa0] sm:$0xff]
    %v117 = vld [vmem:[#allocation5 + $0xa8] sm:$0xff]
    %v118 = vld [vmem:[#allocation5 + $0xb0] sm:$0xff]
    %v119 = vld [vmem:[#allocation5 + $0xb8] sm:$0xff]
    %v120 = vld [vmem:[#allocation5 + $0xc0] sm:$0xff]
    %v121 = vld [vmem:[#allocation5 + $0xc8] sm:$0xff]
    %v122 = vld [vmem:[#allocation5 + $0xd0] sm:$0xff]
    %v123 = vld [vmem:[#allocation5 + $0xd8] sm:$0xff]
    %v124 = vld [vmem:[#allocation5 + $0xe0] sm:$0xff]
    %v125 = vld [vmem:[#allocation5 + $0xe8] sm:$0xff]
    %v126 = vld [vmem:[#allocation5 + $0xf0] sm:$0xff]
    %v127 = vld [vmem:[#allocation5 + $0xf8] sm:$0xff]
    %v128 = vld [vmem:[#allocation5 + $0x100] sm:$0xff]
    %v129 = vld [vmem:[#allocation5 + $0x108] sm:$0xff]
    %v130 = vld [vmem:[#allocation5 + $0x110] sm:$0xff]
    %v131 = vld [vmem:[#allocation5 + $0x118] sm:$0xff]
    %v132 = vld [vmem:[#allocation5 + $0x120] sm:$0xff]
    %v133 = vld [vmem:[#allocation5 + $0x128] sm:$0xff]
    %v134 = vld [vmem:[#allocation5 + $0x130] sm:$0xff]
    %v135 = vld [vmem:[#allocation5 + $0x138] sm:$0xff]
    %v136 = vld [vmem:[#allocation5 + $0x140] sm:$0xff]
    %v137 = vld [vmem:[#allocation5 + $0x148] sm:$0xff]
    %v138 = vld [vmem:[#allocation5 + $0x150] sm:$0xff]
    %v139 = vld [vmem:[#allocation5 + $0x158] sm:$0xff]
    %v140 = vld [vmem:[#allocation5 + $0x160] sm:$0xff]
    %v141 = vld [vmem:[#allocation5 + $0x168] sm:$0xff]
    %v142 = vld [vmem:[#allocation5 + $0x170] sm:$0xff]
    %v143 = vld [vmem:[#allocation5 + $0x178] sm:$0xff]
    %v144 = vld [vmem:[#allocation5 + $0x180] sm:$0xff]
    %v145 = vld [vmem:[#allocation5 + $0x188] sm:$0xff]
    %v146 = vld [vmem:[#allocation5 + $0x190] sm:$0xff]
    %v147 = vld [vmem:[#allocation5 + $0x198] sm:$0xff]
    %v148 = vld [vmem:[#allocation5 + $0x1a0] sm:$0xff]
    %v149 = vld [vmem:[#allocation5 + $0x1a8] sm:$0xff]
    %v150 = vld [vmem:[#allocation5 + $0x1b0] sm:$0xff]
    %v151 = vld [vmem:[#allocation5 + $0x1b8] sm:$0xff]
    %v152 = vld [vmem:[#allocation5 + $0x1c0] sm:$0xff]
    %v153 = vld [vmem:[#allocation5 + $0x1c8] sm:$0xff]
    %v154 = vld [vmem:[#allocation5 + $0x1d0] sm:$0xff]
    %v155 = vld [vmem:[#allocation5 + $0x1d8] sm:$0xff]
    %v156 = vld [vmem:[#allocation5 + $0x1e0] sm:$0xff]
    %v157 = vld [vmem:[#allocation5 + $0x1e8] sm:$0xff]
    %v158 = vld [vmem:[#allocation5 + $0x1f0] sm:$0xff]
    %v159 = vld [vmem:[#allocation5 + $0x1f8] sm:$0xff]
    %v160 = vld [vmem:[#allocation7] sm:$0xf]
    %v162 = vlaneseq
    %v163 = vshrl.u32 %v162, 7
    %v164 = vsub.s32 0, %v163
    %v165 = vrot.slane %v160, %v164
    %v166 = vlaneseq
    %v167 = vshrl.u32 %v166, 7
    %v168 = vsub.s32 1, %v167
    %v169 = vrot.slane %v160, %v168
    %v170 = vlaneseq
    %v171 = vshrl.u32 %v170, 7
    %v172 = vsub.s32 2, %v171
    %v173 = vrot.slane %v160, %v172
    %v174 = vlaneseq
    %v175 = vshrl.u32 %v174, 7
    %v176 = vsub.s32 3, %v175
    %v177 = vrot.slane %v160, %v176
    %v246 = vunpack.c.l.b16 %v96
    %v247 = vunpack.c.h.b16 %v96
    %v248 = vunpack.c.l.b16 %v97
    %v249 = vunpack.c.h.b16 %v97
    %v250 = vunpack.c.l.b16 %v98
    %v251 = vunpack.c.h.b16 %v98
    %v252 = vunpack.c.l.b16 %v99
    %v253 = vunpack.c.h.b16 %v99
    %v254 = vunpack.c.l.b16 %v100
    %v255 = vunpack.c.h.b16 %v100
    %v256 = vunpack.c.l.b16 %v101
    %v257 = vunpack.c.h.b16 %v101
    %v258 = vunpack.c.l.b16 %v102
    %v259 = vunpack.c.h.b16 %v102
    %v260 = vunpack.c.l.b16 %v103
    %v261 = vunpack.c.h.b16 %v103
    %v262 = vunpack.c.l.b16 %v104
    %v263 = vunpack.c.h.b16 %v104
    %v264 = vunpack.c.l.b16 %v105
    %v265 = vunpack.c.h.b16 %v105
    %v266 = vunpack.c.l.b16 %v106
    %v267 = vunpack.c.h.b16 %v106
    %v268 = vunpack.c.l.b16 %v107
    %v269 = vunpack.c.h.b16 %v107
    %v270 = vunpack.c.l.b16 %v108
    %v271 = vunpack.c.h.b16 %v108
    %v272 = vunpack.c.l.b16 %v109
    %v273 = vunpack.c.h.b16 %v109
    %v274 = vunpack.c.l.b16 %v110
    %v275 = vunpack.c.h.b16 %v110
    %v276 = vunpack.c.l.b16 %v111
    %v277 = vunpack.c.h.b16 %v111
    %v278 = vunpack.c.l.b16 %v112
    %v279 = vunpack.c.h.b16 %v112
    %v280 = vunpack.c.l.b16 %v113
    %v281 = vunpack.c.h.b16 %v113
    %v282 = vunpack.c.l.b16 %v114
    %v283 = vunpack.c.h.b16 %v114
    %v284 = vunpack.c.l.b16 %v115
    %v285 = vunpack.c.h.b16 %v115
    %v286 = vunpack.c.l.b16 %v116
    %v287 = vunpack.c.h.b16 %v116
    %v288 = vunpack.c.l.b16 %v117
    %v289 = vunpack.c.h.b16 %v117
    %v290 = vunpack.c.l.b16 %v118
    %v291 = vunpack.c.h.b16 %v118
    %v292 = vunpack.c.l.b16 %v119
    %v293 = vunpack.c.h.b16 %v119
    %v294 = vunpack.c.l.b16 %v120
    %v295 = vunpack.c.h.b16 %v120
    %v296 = vunpack.c.l.b16 %v121
    %v297 = vunpack.c.h.b16 %v121
    %v298 = vunpack.c.l.b16 %v122
    %v299 = vunpack.c.h.b16 %v122
    %v300 = vunpack.c.l.b16 %v123
    %v301 = vunpack.c.h.b16 %v123
    %v302 = vunpack.c.l.b16 %v124
    %v303 = vunpack.c.h.b16 %v124
    %v304 = vunpack.c.l.b16 %v125
    %v305 = vunpack.c.h.b16 %v125
    %v306 = vunpack.c.l.b16 %v126
    %v307 = vunpack.c.h.b16 %v126
    %v308 = vunpack.c.l.b16 %v127
    %v309 = vunpack.c.h.b16 %v127
    %v310 = vunpack.c.l.b16 %v128
    %v311 = vunpack.c.h.b16 %v128
    %v312 = vunpack.c.l.b16 %v129
    %v313 = vunpack.c.h.b16 %v129
    %v314 = vunpack.c.l.b16 %v130
    %v315 = vunpack.c.h.b16 %v130
    %v316 = vunpack.c.l.b16 %v131
    %v317 = vunpack.c.h.b16 %v131
    %v318 = vunpack.c.l.b16 %v132
    %v319 = vunpack.c.h.b16 %v132
    %v320 = vunpack.c.l.b16 %v133
    %v321 = vunpack.c.h.b16 %v133
    %v322 = vunpack.c.l.b16 %v134
    %v323 = vunpack.c.h.b16 %v134
    %v324 = vunpack.c.l.b16 %v135
    %v325 = vunpack.c.h.b16 %v135
    %v326 = vunpack.c.l.b16 %v136
    %v327 = vunpack.c.h.b16 %v136
    %v328 = vunpack.c.l.b16 %v137
    %v329 = vunpack.c.h.b16 %v137
    %v330 = vunpack.c.l.b16 %v138
    %v331 = vunpack.c.h.b16 %v138
    %v332 = vunpack.c.l.b16 %v139
    %v333 = vunpack.c.h.b16 %v139
    %v334 = vunpack.c.l.b16 %v140
    %v335 = vunpack.c.h.b16 %v140
    %v336 = vunpack.c.l.b16 %v141
    %v337 = vunpack.c.h.b16 %v141
    %v338 = vunpack.c.l.b16 %v142
    %v339 = vunpack.c.h.b16 %v142
    %v340 = vunpack.c.l.b16 %v143
    %v341 = vunpack.c.h.b16 %v143
    %v342 = vunpack.c.l.b16 %v144
    %v343 = vunpack.c.h.b16 %v144
    %v344 = vunpack.c.l.b16 %v145
    %v345 = vunpack.c.h.b16 %v145
    %v346 = vunpack.c.l.b16 %v146
    %v347 = vunpack.c.h.b16 %v146
    %v348 = vunpack.c.l.b16 %v147
    %v349 = vunpack.c.h.b16 %v147
    %v350 = vunpack.c.l.b16 %v148
    %v351 = vunpack.c.h.b16 %v148
    %v352 = vunpack.c.l.b16 %v149
    %v353 = vunpack.c.h.b16 %v149
    %v354 = vunpack.c.l.b16 %v150
    %v355 = vunpack.c.h.b16 %v150
    %v356 = vunpack.c.l.b16 %v151
    %v357 = vunpack.c.h.b16 %v151
    %v358 = vunpack.c.l.b16 %v152
    %v359 = vunpack.c.h.b16 %v152
    %v360 = vunpack.c.l.b16 %v153
    %v361 = vunpack.c.h.b16 %v153
    %v362 = vunpack.c.l.b16 %v154
    %v363 = vunpack.c.h.b16 %v154
    %v364 = vunpack.c.l.b16 %v155
    %v365 = vunpack.c.h.b16 %v155
    %v366 = vunpack.c.l.b16 %v156
    %v367 = vunpack.c.h.b16 %v156
    %v368 = vunpack.c.l.b16 %v157
    %v369 = vunpack.c.h.b16 %v157
    %v370 = vunpack.c.l.b16 %v158
    %v371 = vunpack.c.h.b16 %v158
    %v372 = vunpack.c.l.b16 %v159
    %v373 = vunpack.c.h.b16 %v159
    %v374 = vpack.c.b16 %v250, %v246
    %v375 = vpack.c.b16 %v251, %v247
    %v376 = vpack.c.b16 %v252, %v248
    %v377 = vpack.c.b16 %v253, %v249
    %v378 = vpack.c.b16 %v258, %v254
    %v379 = vpack.c.b16 %v259, %v255
    %v380 = vpack.c.b16 %v260, %v256
    %v381 = vpack.c.b16 %v261, %v257
    %v382 = vpack.c.b16 %v266, %v262
    %v383 = vpack.c.b16 %v267, %v263
    %v384 = vpack.c.b16 %v268, %v264
    %v385 = vpack.c.b16 %v269, %v265
    %v386 = vpack.c.b16 %v274, %v270
    %v387 = vpack.c.b16 %v275, %v271
    %v388 = vpack.c.b16 %v276, %v272
    %v389 = vpack.c.b16 %v277, %v273
    %v390 = vpack.c.b16 %v282, %v278
    %v391 = vpack.c.b16 %v283, %v279
    %v392 = vpack.c.b16 %v284, %v280
    %v393 = vpack.c.b16 %v285, %v281
    %v394 = vpack.c.b16 %v290, %v286
    %v395 = vpack.c.b16 %v291, %v287
    %v396 = vpack.c.b16 %v292, %v288
    %v397 = vpack.c.b16 %v293, %v289
    %v398 = vpack.c.b16 %v298, %v294
    %v399 = vpack.c.b16 %v299, %v295
    %v400 = vpack.c.b16 %v300, %v296
    %v401 = vpack.c.b16 %v301, %v297
    %v402 = vpack.c.b16 %v306, %v302
    %v403 = vpack.c.b16 %v307, %v303
    %v404 = vpack.c.b16 %v308, %v304
    %v405 = vpack.c.b16 %v309, %v305
    %v406 = vpack.c.b16 %v314, %v310
    %v407 = vpack.c.b16 %v315, %v311
    %v408 = vpack.c.b16 %v316, %v312
    %v409 = vpack.c.b16 %v317, %v313
    %v410 = vpack.c.b16 %v322, %v318
    %v411 = vpack.c.b16 %v323, %v319
    %v412 = vpack.c.b16 %v324, %v320
    %v413 = vpack.c.b16 %v325, %v321
    %v414 = vpack.c.b16 %v330, %v326
    %v415 = vpack.c.b16 %v331, %v327
    %v416 = vpack.c.b16 %v332, %v328
    %v417 = vpack.c.b16 %v333, %v329
    %v418 = vpack.c.b16 %v338, %v334
    %v419 = vpack.c.b16 %v339, %v335
    %v420 = vpack.c.b16 %v340, %v336
    %v421 = vpack.c.b16 %v341, %v337
    %v422 = vpack.c.b16 %v346, %v342
    %v423 = vpack.c.b16 %v347, %v343
    %v424 = vpack.c.b16 %v348, %v344
    %v425 = vpack.c.b16 %v349, %v345
    %v426 = vpack.c.b16 %v354, %v350
    %v427 = vpack.c.b16 %v355, %v351
    %v428 = vpack.c.b16 %v356, %v352
    %v429 = vpack.c.b16 %v357, %v353
    %v430 = vpack.c.b16 %v362, %v358
    %v431 = vpack.c.b16 %v363, %v359
    %v432 = vpack.c.b16 %v364, %v360
    %v433 = vpack.c.b16 %v365, %v361
    %v434 = vpack.c.b16 %v370, %v366
    %v435 = vpack.c.b16 %v371, %v367
    %v436 = vpack.c.b16 %v372, %v368
    %v437 = vpack.c.b16 %v373, %v369
    %502 = vmatprep.subr.bf16.mxu0 %v403
    %503 = vmatpush1.bf16.msra.mxu0 %v402
    %504 = vmatprep.subr.bf16.mxu0 %v399
    %505 = vmatpush1.bf16.msra.mxu0 %v398
    %506 = vmatprep.subr.bf16.mxu0 %v395
    %507 = vmatpush1.bf16.msra.mxu0 %v394
    %508 = vmatprep.subr.bf16.mxu0 %v391
    %509 = vmatpush1.bf16.msra.mxu0 %v390
    %510 = vmatprep.subr.bf16.mxu0 %v387
    %511 = vmatpush1.bf16.msra.mxu0 %v386
    %512 = vmatprep.subr.bf16.mxu0 %v383
    %513 = vmatpush1.bf16.msra.mxu0 %v382
    %514 = vmatprep.subr.bf16.mxu0 %v379
    %515 = vmatpush1.bf16.msra.mxu0 %v378
    %516 = vmatprep.subr.bf16.mxu0 %v375
    %517 = vmatpush1.bf16.msra.mxu0 %v374
    %518 = vmatprep.subr.bf16.mxu0 %v435
    %519 = vmatpush2.bf16.msra.mxu0 %v434
    %520 = vmatprep.subr.bf16.mxu0 %v431
    %521 = vmatpush2.bf16.msra.mxu0 %v430
    %522 = vmatprep.subr.bf16.mxu0 %v427
    %523 = vmatpush2.bf16.msra.mxu0 %v426
    %524 = vmatprep.subr.bf16.mxu0 %v423
    %525 = vmatpush2.bf16.msra.mxu0 %v422
    %526 = vmatprep.subr.bf16.mxu0 %v419
    %527 = vmatpush2.bf16.msra.mxu0 %v418
    %528 = vmatprep.subr.bf16.mxu0 %v415
    %529 = vmatpush2.bf16.msra.mxu0 %v414
    %530 = vmatprep.subr.bf16.mxu0 %v411
    %531 = vmatpush2.bf16.msra.mxu0 %v410
    %532 = vmatprep.subr.bf16.mxu0 %v407
    %533 = vmatpush2.bf16.msra.mxu0 %v406
    %534 = vmatprep.mubr.bf16.mxu0 %v95
    %535 = vmatmul.mubr.bf16.gmra.mxu0 %v94
    %v536 = vpop.f32.mrf.mxu0
    %v537 = vadd.f32 %v165, %v536
    %v538 = vpop.f32.mrf.mxu0
    %v539 = vadd.f32 %v169, %v538
    %v540 = vpop.f32.mrf.mxu0
    %v541 = vpop.f32.mrf.mxu0
    %542 = vdwg.mxu0
    %543 = vmatprep.subr.bf16.mxu0 %v405
    %544 = vmatpush1.bf16.msra.mxu0 %v404
    %545 = vmatprep.subr.bf16.mxu0 %v401
    %546 = vmatpush1.bf16.msra.mxu0 %v400
    %547 = vmatprep.subr.bf16.mxu0 %v397
    %548 = vmatpush1.bf16.msra.mxu0 %v396
    %549 = vmatprep.subr.bf16.mxu0 %v393
    %550 = vmatpush1.bf16.msra.mxu0 %v392
    %551 = vmatprep.subr.bf16.mxu0 %v389
    %552 = vmatpush1.bf16.msra.mxu0 %v388
    %553 = vmatprep.subr.bf16.mxu0 %v385
    %554 = vmatpush1.bf16.msra.mxu0 %v384
    %555 = vmatprep.subr.bf16.mxu0 %v381
    %556 = vmatpush1.bf16.msra.mxu0 %v380
    %557 = vmatprep.subr.bf16.mxu0 %v377
    %558 = vmatpush1.bf16.msra.mxu0 %v376
    %559 = vmatprep.subr.bf16.mxu0 %v437
    %560 = vmatpush2.bf16.msra.mxu0 %v436
    %561 = vmatprep.subr.bf16.mxu0 %v433
    %562 = vmatpush2.bf16.msra.mxu0 %v432
    %563 = vmatprep.subr.bf16.mxu0 %v429
    %564 = vmatpush2.bf16.msra.mxu0 %v428
    %565 = vmatprep.subr.bf16.mxu0 %v425
    %566 = vmatpush2.bf16.msra.mxu0 %v424
    %567 = vmatprep.subr.bf16.mxu0 %v421
    %568 = vmatpush2.bf16.msra.mxu0 %v420
    %569 = vmatprep.subr.bf16.mxu0 %v417
    %570 = vmatpush2.bf16.msra.mxu0 %v416
    %571 = vmatprep.subr.bf16.mxu0 %v413
    %572 = vmatpush2.bf16.msra.mxu0 %v412
    %573 = vmatprep.subr.bf16.mxu0 %v409
    %574 = vmatpush2.bf16.msra.mxu0 %v408
    %575 = vmatprep.mubr.bf16.mxu0 %v95
    %576 = vmatmul.mubr.bf16.gmra.mxu0 %v94
    %v577 = vpop.f32.mrf.mxu0
    %v578 = vadd.f32 %v173, %v577
    %v579 = vpop.f32.mrf.mxu0
    %v580 = vadd.f32 %v177, %v579
    %v581 = vpop.f32.mrf.mxu0
    %v582 = vpop.f32.mrf.mxu0
    %583 = vdwg.mxu0
    %v584 = vmax.f32 %v537, 0.0
    %v585 = vmax.f32 %v539, 0.0
    %v586 = vmax.f32 %v578, 0.0
    %v587 = vmax.f32 %v580, 0.0
    %v588 = vpack.c.bf16 %v584, %v584
    %v589 = vpack.c.bf16 %v585, %v585
    %v590 = vpack.c.bf16 %v586, %v586
    %v591 = vpack.c.bf16 %v587, %v587
    %v592 = vld [vmem:[#allocation8] sm:$0xff]
    %v593 = vld [vmem:[#allocation8 + $0x8] sm:$0xff]
    %v594 = vld [vmem:[#allocation8 + $0x10] sm:$0xf]
    %v595 = vld [vmem:[#allocation8 + $0x14] sm:$0xff]
    %v596 = vld [vmem:[#allocation8 + $0x1c] sm:$0xff]
    %v597 = vld [vmem:[#allocation8 + $0x24] sm:$0xf]
    %v598 = vld [vmem:[#allocation8 + $0x28] sm:$0xff]
    %v599 = vld [vmem:[#allocation8 + $0x30] sm:$0xff]
    %v600 = vld [vmem:[#allocation8 + $0x38] sm:$0xf]
    %v601 = vld [vmem:[#allocation8 + $0x3c] sm:$0xff]
    %v602 = vld [vmem:[#allocation8 + $0x44] sm:$0xff]
    %v603 = vld [vmem:[#allocation8 + $0x4c] sm:$0xf]
    %v604 = vld [vmem:[#allocation8 + $0x50] sm:$0xff]
    %v605 = vld [vmem:[#allocation8 + $0x58] sm:$0xff]
    %v606 = vld [vmem:[#allocation8 + $0x60] sm:$0xf]
    %v607 = vld [vmem:[#allocation8 + $0x64] sm:$0xff]
    %v608 = vld [vmem:[#allocation8 + $0x6c] sm:$0xff]
    %v609 = vld [vmem:[#allocation8 + $0x74] sm:$0xf]
    %v610 = vld [vmem:[#allocation8 + $0x78] sm:$0xff]
    %v611 = vld [vmem:[#allocation8 + $0x80] sm:$0xff]
    %v612 = vld [vmem:[#allocation8 + $0x88] sm:$0xf]
    %v613 = vld [vmem:[#allocation8 + $0x8c] sm:$0xff]
    %v614 = vld [vmem:[#allocation8 + $0x94] sm:$0xff]
    %v615 = vld [vmem:[#allocation8 + $0x9c] sm:$0xf]
    %v616 = vld [vmem:[#allocation8 + $0xa0] sm:$0xff]
    %v617 = vld [vmem:[#allocation8 + $0xa8] sm:$0xff]
    %v618 = vld [vmem:[#allocation8 + $0xb0] sm:$0xf]
    %v619 = vld [vmem:[#allocation8 + $0xb4] sm:$0xff]
    %v620 = vld [vmem:[#allocation8 + $0xbc] sm:$0xff]
    %v621 = vld [vmem:[#allocation8 + $0xc4] sm:$0xf]
    %v622 = vld [vmem:[#allocation8 + $0xc8] sm:$0xff]
    %v623 = vld [vmem:[#allocation8 + $0xd0] sm:$0xff]
    %v624 = vld [vmem:[#allocation8 + $0xd8] sm:$0xf]
    %v625 = vld [vmem:[#allocation8 + $0xdc] sm:$0xff]
    %v626 = vld [vmem:[#allocation8 + $0xe4] sm:$0xff]
    %v627 = vld [vmem:[#allocation8 + $0xec] sm:$0xf]
    %v628 = vld [vmem:[#allocation8 + $0xf0] sm:$0xff]
    %v629 = vld [vmem:[#allocation8 + $0xf8] sm:$0xff]
    %v630 = vld [vmem:[#allocation8 + $0x100] sm:$0xf]
    %v631 = vld [vmem:[#allocation8 + $0x104] sm:$0xff]
    %v632 = vld [vmem:[#allocation8 + $0x10c] sm:$0xff]
    %v633 = vld [vmem:[#allocation8 + $0x114] sm:$0xf]
    %v634 = vld [vmem:[#allocation8 + $0x118] sm:$0xff]
    %v635 = vld [vmem:[#allocation8 + $0x120] sm:$0xff]
    %v636 = vld [vmem:[#allocation8 + $0x128] sm:$0xf]
    %v637 = vld [vmem:[#allocation8 + $0x12c] sm:$0xff]
    %v638 = vld [vmem:[#allocation8 + $0x134] sm:$0xff]
    %v639 = vld [vmem:[#allocation8 + $0x13c] sm:$0xf]
    %v640 = vld [vmem:[#allocation8 + $0x140] sm:$0xff]
    %v641 = vld [vmem:[#allocation8 + $0x148] sm:$0xff]
    %v642 = vld [vmem:[#allocation8 + $0x150] sm:$0xf]
    %v643 = vld [vmem:[#allocation8 + $0x154] sm:$0xff]
    %v644 = vld [vmem:[#allocation8 + $0x15c] sm:$0xff]
    %v645 = vld [vmem:[#allocation8 + $0x164] sm:$0xf]
    %v646 = vld [vmem:[#allocation8 + $0x168] sm:$0xff]
    %v647 = vld [vmem:[#allocation8 + $0x170] sm:$0xff]
    %v648 = vld [vmem:[#allocation8 + $0x178] sm:$0xf]
    %v649 = vld [vmem:[#allocation8 + $0x17c] sm:$0xff]
    %v650 = vld [vmem:[#allocation8 + $0x184] sm:$0xff]
    %v651 = vld [vmem:[#allocation8 + $0x18c] sm:$0xf]
    %v652 = vld [vmem:[#allocation8 + $0x190] sm:$0xff]
    %v653 = vld [vmem:[#allocation8 + $0x198] sm:$0xff]
    %v654 = vld [vmem:[#allocation8 + $0x1a0] sm:$0xf]
    %v655 = vld [vmem:[#allocation8 + $0x1a4] sm:$0xff]
    %v656 = vld [vmem:[#allocation8 + $0x1ac] sm:$0xff]
    %v657 = vld [vmem:[#allocation8 + $0x1b4] sm:$0xf]
    %v658 = vld [vmem:[#allocation8 + $0x1b8] sm:$0xff]
    %v659 = vld [vmem:[#allocation8 + $0x1c0] sm:$0xff]
    %v660 = vld [vmem:[#allocation8 + $0x1c8] sm:$0xf]
    %v661 = vld [vmem:[#allocation8 + $0x1cc] sm:$0xff]
    %v662 = vld [vmem:[#allocation8 + $0x1d4] sm:$0xff]
    %v663 = vld [vmem:[#allocation8 + $0x1dc] sm:$0xf]
    %v664 = vld [vmem:[#allocation8 + $0x1e0] sm:$0xff]
    %v665 = vld [vmem:[#allocation8 + $0x1e8] sm:$0xff]
    %v666 = vld [vmem:[#allocation8 + $0x1f0] sm:$0xf]
    %v667 = vld [vmem:[#allocation8 + $0x1f4] sm:$0xff]
    %v668 = vld [vmem:[#allocation8 + $0x1fc] sm:$0xff]
    %v669 = vld [vmem:[#allocation8 + $0x204] sm:$0xf]
    %v670 = vld [vmem:[#allocation8 + $0x208] sm:$0xff]
    %v671 = vld [vmem:[#allocation8 + $0x210] sm:$0xff]
    %v672 = vld [vmem:[#allocation8 + $0x218] sm:$0xf]
    %v673 = vld [vmem:[#allocation8 + $0x21c] sm:$0xff]
    %v674 = vld [vmem:[#allocation8 + $0x224] sm:$0xff]
    %v675 = vld [vmem:[#allocation8 + $0x22c] sm:$0xf]
    %v676 = vld [vmem:[#allocation8 + $0x230] sm:$0xff]
    %v677 = vld [vmem:[#allocation8 + $0x238] sm:$0xff]
    %v678 = vld [vmem:[#allocation8 + $0x240] sm:$0xf]
    %v679 = vld [vmem:[#allocation8 + $0x244] sm:$0xff]
    %v680 = vld [vmem:[#allocation8 + $0x24c] sm:$0xff]
    %v681 = vld [vmem:[#allocation8 + $0x254] sm:$0xf]
    %v682 = vld [vmem:[#allocation8 + $0x258] sm:$0xff]
    %v683 = vld [vmem:[#allocation8 + $0x260] sm:$0xff]
    %v684 = vld [vmem:[#allocation8 + $0x268] sm:$0xf]
    %v685 = vld [vmem:[#allocation8 + $0x26c] sm:$0xff]
    %v686 = vld [vmem:[#allocation8 + $0x274] sm:$0xff]
    %v687 = vld [vmem:[#allocation8 + $0x27c] sm:$0xf]
    %v688 = vld [vmem:[#allocation8 + $0x280] sm:$0xff]
    %v689 = vld [vmem:[#allocation8 + $0x288] sm:$0xff]
    %v690 = vld [vmem:[#allocation8 + $0x290] sm:$0xf]
    %v691 = vld [vmem:[#allocation8 + $0x294] sm:$0xff]
    %v692 = vld [vmem:[#allocation8 + $0x29c] sm:$0xff]
    %v693 = vld [vmem:[#allocation8 + $0x2a4] sm:$0xf]
    %v694 = vld [vmem:[#allocation8 + $0x2a8] sm:$0xff]
    %v695 = vld [vmem:[#allocation8 + $0x2b0] sm:$0xff]
    %v696 = vld [vmem:[#allocation8 + $0x2b8] sm:$0xf]
    %v697 = vld [vmem:[#allocation8 + $0x2bc] sm:$0xff]
    %v698 = vld [vmem:[#allocation8 + $0x2c4] sm:$0xff]
    %v699 = vld [vmem:[#allocation8 + $0x2cc] sm:$0xf]
    %v700 = vld [vmem:[#allocation8 + $0x2d0] sm:$0xff]
    %v701 = vld [vmem:[#allocation8 + $0x2d8] sm:$0xff]
    %v702 = vld [vmem:[#allocation8 + $0x2e0] sm:$0xf]
    %v703 = vld [vmem:[#allocation8 + $0x2e4] sm:$0xff]
    %v704 = vld [vmem:[#allocation8 + $0x2ec] sm:$0xff]
    %v705 = vld [vmem:[#allocation8 + $0x2f4] sm:$0xf]
    %v706 = vld [vmem:[#allocation8 + $0x2f8] sm:$0xff]
    %v707 = vld [vmem:[#allocation8 + $0x300] sm:$0xff]
    %v708 = vld [vmem:[#allocation8 + $0x308] sm:$0xf]
    %v709 = vld [vmem:[#allocation8 + $0x30c] sm:$0xff]
    %v710 = vld [vmem:[#allocation8 + $0x314] sm:$0xff]
    %v711 = vld [vmem:[#allocation8 + $0x31c] sm:$0xf]
    %v712 = vld [vmem:[#allocation8 + $0x320] sm:$0xff]
    %v713 = vld [vmem:[#allocation8 + $0x328] sm:$0xff]
    %v714 = vld [vmem:[#allocation8 + $0x330] sm:$0xf]
    %v715 = vld [vmem:[#allocation8 + $0x334] sm:$0xff]
    %v716 = vld [vmem:[#allocation8 + $0x33c] sm:$0xff]
    %v717 = vld [vmem:[#allocation8 + $0x344] sm:$0xf]
    %v718 = vld [vmem:[#allocation8 + $0x348] sm:$0xff]
    %v719 = vld [vmem:[#allocation8 + $0x350] sm:$0xff]
    %v720 = vld [vmem:[#allocation8 + $0x358] sm:$0xf]
    %v721 = vld [vmem:[#allocation8 + $0x35c] sm:$0xff]
    %v722 = vld [vmem:[#allocation8 + $0x364] sm:$0xff]
    %v723 = vld [vmem:[#allocation8 + $0x36c] sm:$0xf]
    %v724 = vld [vmem:[#allocation8 + $0x370] sm:$0xff]
    %v725 = vld [vmem:[#allocation8 + $0x378] sm:$0xff]
    %v726 = vld [vmem:[#allocation8 + $0x380] sm:$0xf]
    %v727 = vld [vmem:[#allocation8 + $0x384] sm:$0xff]
    %v728 = vld [vmem:[#allocation8 + $0x38c] sm:$0xff]
    %v729 = vld [vmem:[#allocation8 + $0x394] sm:$0xf]
    %v730 = vld [vmem:[#allocation8 + $0x398] sm:$0xff]
    %v731 = vld [vmem:[#allocation8 + $0x3a0] sm:$0xff]
    %v732 = vld [vmem:[#allocation8 + $0x3a8] sm:$0xf]
    %v733 = vld [vmem:[#allocation8 + $0x3ac] sm:$0xff]
    %v734 = vld [vmem:[#allocation8 + $0x3b4] sm:$0xff]
    %v735 = vld [vmem:[#allocation8 + $0x3bc] sm:$0xf]
    %v736 = vld [vmem:[#allocation8 + $0x3c0] sm:$0xff]
    %v737 = vld [vmem:[#allocation8 + $0x3c8] sm:$0xff]
    %v738 = vld [vmem:[#allocation8 + $0x3d0] sm:$0xf]
    %v739 = vld [vmem:[#allocation8 + $0x3d4] sm:$0xff]
    %v740 = vld [vmem:[#allocation8 + $0x3dc] sm:$0xff]
    %v741 = vld [vmem:[#allocation8 + $0x3e4] sm:$0xf]
    %v742 = vld [vmem:[#allocation8 + $0x3e8] sm:$0xff]
    %v743 = vld [vmem:[#allocation8 + $0x3f0] sm:$0xff]
    %v744 = vld [vmem:[#allocation8 + $0x3f8] sm:$0xf]
    %v745 = vld [vmem:[#allocation8 + $0x3fc] sm:$0xff]
    %v746 = vld [vmem:[#allocation8 + $0x404] sm:$0xff]
    %v747 = vld [vmem:[#allocation8 + $0x40c] sm:$0xf]
    %v748 = vld [vmem:[#allocation8 + $0x410] sm:$0xff]
    %v749 = vld [vmem:[#allocation8 + $0x418] sm:$0xff]
    %v750 = vld [vmem:[#allocation8 + $0x420] sm:$0xf]
    %v751 = vld [vmem:[#allocation8 + $0x424] sm:$0xff]
    %v752 = vld [vmem:[#allocation8 + $0x42c] sm:$0xff]
    %v753 = vld [vmem:[#allocation8 + $0x434] sm:$0xf]
    %v754 = vld [vmem:[#allocation8 + $0x438] sm:$0xff]
    %v755 = vld [vmem:[#allocation8 + $0x440] sm:$0xff]
    %v756 = vld [vmem:[#allocation8 + $0x448] sm:$0xf]
    %v757 = vld [vmem:[#allocation8 + $0x44c] sm:$0xff]
    %v758 = vld [vmem:[#allocation8 + $0x454] sm:$0xff]
    %v759 = vld [vmem:[#allocation8 + $0x45c] sm:$0xf]
    %v760 = vld [vmem:[#allocation8 + $0x460] sm:$0xff]
    %v761 = vld [vmem:[#allocation8 + $0x468] sm:$0xff]
    %v762 = vld [vmem:[#allocation8 + $0x470] sm:$0xf]
    %v763 = vld [vmem:[#allocation8 + $0x474] sm:$0xff]
    %v764 = vld [vmem:[#allocation8 + $0x47c] sm:$0xff]
    %v765 = vld [vmem:[#allocation8 + $0x484] sm:$0xf]
    %v766 = vld [vmem:[#allocation8 + $0x488] sm:$0xff]
    %v767 = vld [vmem:[#allocation8 + $0x490] sm:$0xff]
    %v768 = vld [vmem:[#allocation8 + $0x498] sm:$0xf]
    %v769 = vld [vmem:[#allocation8 + $0x49c] sm:$0xff]
    %v770 = vld [vmem:[#allocation8 + $0x4a4] sm:$0xff]
    %v771 = vld [vmem:[#allocation8 + $0x4ac] sm:$0xf]
    %v772 = vld [vmem:[#allocation8 + $0x4b0] sm:$0xff]
    %v773 = vld [vmem:[#allocation8 + $0x4b8] sm:$0xff]
    %v774 = vld [vmem:[#allocation8 + $0x4c0] sm:$0xf]
    %v775 = vld [vmem:[#allocation8 + $0x4c4] sm:$0xff]
    %v776 = vld [vmem:[#allocation8 + $0x4cc] sm:$0xff]
    %v777 = vld [vmem:[#allocation8 + $0x4d4] sm:$0xf]
    %v778 = vld [vmem:[#allocation8 + $0x4d8] sm:$0xff]
    %v779 = vld [vmem:[#allocation8 + $0x4e0] sm:$0xff]
    %v780 = vld [vmem:[#allocation8 + $0x4e8] sm:$0xf]
    %v781 = vld [vmem:[#allocation8 + $0x4ec] sm:$0xff]
    %v782 = vld [vmem:[#allocation8 + $0x4f4] sm:$0xff]
    %v783 = vld [vmem:[#allocation8 + $0x4fc] sm:$0xf]
    %v784 = vld [vmem:[%s4] sm:$0x1f]
    %v786 = vlaneseq
    %v787 = vshrl.u32 %v786, 7
    %v788 = vsub.s32 0, %v787
    %v789 = vrot.slane %v784, %v788
    %v790 = vlaneseq
    %v791 = vshrl.u32 %v790, 7
    %v792 = vsub.s32 1, %v791
    %v793 = vrot.slane %v784, %v792
    %v794 = vlaneseq
    %v795 = vshrl.u32 %v794, 7
    %v796 = vsub.s32 2, %v795
    %v797 = vrot.slane %v784, %v796
    %v798 = vlaneseq
    %v799 = vshrl.u32 %v798, 7
    %v800 = vsub.s32 3, %v799
    %v801 = vrot.slane %v784, %v800
    %v802 = vlaneseq
    %v803 = vshrl.u32 %v802, 7
    %v804 = vsub.s32 4, %v803
    %v805 = vrot.slane %v784, %v804
    %v1003 = vunpack.c.l.b16 %v592
    %v1004 = vunpack.c.h.b16 %v592
    %v1005 = vunpack.c.l.b16 %v593
    %v1006 = vunpack.c.h.b16 %v593
    %v1007 = vunpack.c.l.b16 %v594
    %v1008 = vunpack.c.l.b16 %v595
    %v1009 = vunpack.c.h.b16 %v595
    %v1010 = vunpack.c.l.b16 %v596
    %v1011 = vunpack.c.h.b16 %v596
    %v1012 = vunpack.c.l.b16 %v597
    %v1013 = vunpack.c.l.b16 %v598
    %v1014 = vunpack.c.h.b16 %v598
    %v1015 = vunpack.c.l.b16 %v599
    %v1016 = vunpack.c.h.b16 %v599
    %v1017 = vunpack.c.l.b16 %v600
    %v1018 = vunpack.c.l.b16 %v601
    %v1019 = vunpack.c.h.b16 %v601
    %v1020 = vunpack.c.l.b16 %v602
    %v1021 = vunpack.c.h.b16 %v602
    %v1022 = vunpack.c.l.b16 %v603
    %v1023 = vunpack.c.l.b16 %v604
    %v1024 = vunpack.c.h.b16 %v604
    %v1025 = vunpack.c.l.b16 %v605
    %v1026 = vunpack.c.h.b16 %v605
    %v1027 = vunpack.c.l.b16 %v606
    %v1028 = vunpack.c.l.b16 %v607
    %v1029 = vunpack.c.h.b16 %v607
    %v1030 = vunpack.c.l.b16 %v608
    %v1031 = vunpack.c.h.b16 %v608
    %v1032 = vunpack.c.l.b16 %v609
    %v1033 = vunpack.c.l.b16 %v610
    %v1034 = vunpack.c.h.b16 %v610
    %v1035 = vunpack.c.l.b16 %v611
    %v1036 = vunpack.c.h.b16 %v611
    %v1037 = vunpack.c.l.b16 %v612
    %v1038 = vunpack.c.l.b16 %v613
    %v1039 = vunpack.c.h.b16 %v613
    %v1040 = vunpack.c.l.b16 %v614
    %v1041 = vunpack.c.h.b16 %v614
    %v1042 = vunpack.c.l.b16 %v615
    %v1043 = vunpack.c.l.b16 %v616
    %v1044 = vunpack.c.h.b16 %v616
    %v1045 = vunpack.c.l.b16 %v617
    %v1046 = vunpack.c.h.b16 %v617
    %v1047 = vunpack.c.l.b16 %v618
    %v1048 = vunpack.c.l.b16 %v619
    %v1049 = vunpack.c.h.b16 %v619
    %v1050 = vunpack.c.l.b16 %v620
    %v1051 = vunpack.c.h.b16 %v620
    %v1052 = vunpack.c.l.b16 %v621
    %v1053 = vunpack.c.l.b16 %v622
    %v1054 = vunpack.c.h.b16 %v622
    %v1055 = vunpack.c.l.b16 %v623
    %v1056 = vunpack.c.h.b16 %v623
    %v1057 = vunpack.c.l.b16 %v624
    %v1058 = vunpack.c.l.b16 %v625
    %v1059 = vunpack.c.h.b16 %v625
    %v1060 = vunpack.c.l.b16 %v626
    %v1061 = vunpack.c.h.b16 %v626
    %v1062 = vunpack.c.l.b16 %v627
    %v1063 = vunpack.c.l.b16 %v628
    %v1064 = vunpack.c.h.b16 %v628
    %v1065 = vunpack.c.l.b16 %v629
    %v1066 = vunpack.c.h.b16 %v629
    %v1067 = vunpack.c.l.b16 %v630
    %v1068 = vunpack.c.l.b16 %v631
    %v1069 = vunpack.c.h.b16 %v631
    %v1070 = vunpack.c.l.b16 %v632
    %v1071 = vunpack.c.h.b16 %v632
    %v1072 = vunpack.c.l.b16 %v633
    %v1073 = vunpack.c.l.b16 %v634
    %v1074 = vunpack.c.h.b16 %v634
    %v1075 = vunpack.c.l.b16 %v635
    %v1076 = vunpack.c.h.b16 %v635
    %v1077 = vunpack.c.l.b16 %v636
    %v1078 = vunpack.c.l.b16 %v637
    %v1079 = vunpack.c.h.b16 %v637
    %v1080 = vunpack.c.l.b16 %v638
    %v1081 = vunpack.c.h.b16 %v638
    %v1082 = vunpack.c.l.b16 %v639
    %v1083 = vunpack.c.l.b16 %v640
    %v1084 = vunpack.c.h.b16 %v640
    %v1085 = vunpack.c.l.b16 %v641
    %v1086 = vunpack.c.h.b16 %v641
    %v1087 = vunpack.c.l.b16 %v642
    %v1088 = vunpack.c.l.b16 %v643
    %v1089 = vunpack.c.h.b16 %v643
    %v1090 = vunpack.c.l.b16 %v644
    %v1091 = vunpack.c.h.b16 %v644
    %v1092 = vunpack.c.l.b16 %v645
    %v1093 = vunpack.c.l.b16 %v646
    %v1094 = vunpack.c.h.b16 %v646
    %v1095 = vunpack.c.l.b16 %v647
    %v1096 = vunpack.c.h.b16 %v647
    %v1097 = vunpack.c.l.b16 %v648
    %v1098 = vunpack.c.l.b16 %v649
    %v1099 = vunpack.c.h.b16 %v649
    %v1100 = vunpack.c.l.b16 %v650
    %v1101 = vunpack.c.h.b16 %v650
    %v1102 = vunpack.c.l.b16 %v651
    %v1103 = vunpack.c.l.b16 %v652
    %v1104 = vunpack.c.h.b16 %v652
    %v1105 = vunpack.c.l.b16 %v653
    %v1106 = vunpack.c.h.b16 %v653
    %v1107 = vunpack.c.l.b16 %v654
    %v1108 = vunpack.c.l.b16 %v655
    %v1109 = vunpack.c.h.b16 %v655
    %v1110 = vunpack.c.l.b16 %v656
    %v1111 = vunpack.c.h.b16 %v656
    %v1112 = vunpack.c.l.b16 %v657
    %v1113 = vunpack.c.l.b16 %v658
    %v1114 = vunpack.c.h.b16 %v658
    %v1115 = vunpack.c.l.b16 %v659
    %v1116 = vunpack.c.h.b16 %v659
    %v1117 = vunpack.c.l.b16 %v660
    %v1118 = vunpack.c.l.b16 %v661
    %v1119 = vunpack.c.h.b16 %v661
    %v1120 = vunpack.c.l.b16 %v662
    %v1121 = vunpack.c.h.b16 %v662
    %v1122 = vunpack.c.l.b16 %v663
    %v1123 = vunpack.c.l.b16 %v664
    %v1124 = vunpack.c.h.b16 %v664
    %v1125 = vunpack.c.l.b16 %v665
    %v1126 = vunpack.c.h.b16 %v665
    %v1127 = vunpack.c.l.b16 %v666
    %v1128 = vunpack.c.l.b16 %v667
    %v1129 = vunpack.c.h.b16 %v667
    %v1130 = vunpack.c.l.b16 %v668
    %v1131 = vunpack.c.h.b16 %v668
    %v1132 = vunpack.c.l.b16 %v669
    %v1133 = vunpack.c.l.b16 %v670
    %v1134 = vunpack.c.h.b16 %v670
    %v1135 = vunpack.c.l.b16 %v671
    %v1136 = vunpack.c.h.b16 %v671
    %v1137 = vunpack.c.l.b16 %v672
    %v1138 = vunpack.c.l.b16 %v673
    %v1139 = vunpack.c.h.b16 %v673
    %v1140 = vunpack.c.l.b16 %v674
    %v1141 = vunpack.c.h.b16 %v674
    %v1142 = vunpack.c.l.b16 %v675
    %v1143 = vunpack.c.l.b16 %v676
    %v1144 = vunpack.c.h.b16 %v676
    %v1145 = vunpack.c.l.b16 %v677
    %v1146 = vunpack.c.h.b16 %v677
    %v1147 = vunpack.c.l.b16 %v678
    %v1148 = vunpack.c.l.b16 %v679
    %v1149 = vunpack.c.h.b16 %v679
    %v1150 = vunpack.c.l.b16 %v680
    %v1151 = vunpack.c.h.b16 %v680
    %v1152 = vunpack.c.l.b16 %v681
    %v1153 = vunpack.c.l.b16 %v682
    %v1154 = vunpack.c.h.b16 %v682
    %v1155 = vunpack.c.l.b16 %v683
    %v1156 = vunpack.c.h.b16 %v683
    %v1157 = vunpack.c.l.b16 %v684
    %v1158 = vunpack.c.l.b16 %v685
    %v1159 = vunpack.c.h.b16 %v685
    %v1160 = vunpack.c.l.b16 %v686
    %v1161 = vunpack.c.h.b16 %v686
    %v1162 = vunpack.c.l.b16 %v687
    %v1163 = vunpack.c.l.b16 %v688
    %v1164 = vunpack.c.h.b16 %v688
    %v1165 = vunpack.c.l.b16 %v689
    %v1166 = vunpack.c.h.b16 %v689
    %v1167 = vunpack.c.l.b16 %v690
    %v1168 = vunpack.c.l.b16 %v691
    %v1169 = vunpack.c.h.b16 %v691
    %v1170 = vunpack.c.l.b16 %v692
    %v1171 = vunpack.c.h.b16 %v692
    %v1172 = vunpack.c.l.b16 %v693
    %v1173 = vunpack.c.l.b16 %v694
    %v1174 = vunpack.c.h.b16 %v694
    %v1175 = vunpack.c.l.b16 %v695
    %v1176 = vunpack.c.h.b16 %v695
    %v1177 = vunpack.c.l.b16 %v696
    %v1178 = vunpack.c.l.b16 %v697
    %v1179 = vunpack.c.h.b16 %v697
    %v1180 = vunpack.c.l.b16 %v698
    %v1181 = vunpack.c.h.b16 %v698
    %v1182 = vunpack.c.l.b16 %v699
    %v1183 = vunpack.c.l.b16 %v700
    %v1184 = vunpack.c.h.b16 %v700
    %v1185 = vunpack.c.l.b16 %v701
    %v1186 = vunpack.c.h.b16 %v701
    %v1187 = vunpack.c.l.b16 %v702
    %v1188 = vunpack.c.l.b16 %v703
    %v1189 = vunpack.c.h.b16 %v703
    %v1190 = vunpack.c.l.b16 %v704
    %v1191 = vunpack.c.h.b16 %v704
    %v1192 = vunpack.c.l.b16 %v705
    %v1193 = vunpack.c.l.b16 %v706
    %v1194 = vunpack.c.h.b16 %v706
    %v1195 = vunpack.c.l.b16 %v707
    %v1196 = vunpack.c.h.b16 %v707
    %v1197 = vunpack.c.l.b16 %v708
    %v1198 = vunpack.c.l.b16 %v709
    %v1199 = vunpack.c.h.b16 %v709
    %v1200 = vunpack.c.l.b16 %v710
    %v1201 = vunpack.c.h.b16 %v710
    %v1202 = vunpack.c.l.b16 %v711
    %v1203 = vunpack.c.l.b16 %v712
    %v1204 = vunpack.c.h.b16 %v712
    %v1205 = vunpack.c.l.b16 %v713
    %v1206 = vunpack.c.h.b16 %v713
    %v1207 = vunpack.c.l.b16 %v714
    %v1208 = vunpack.c.l.b16 %v715
    %v1209 = vunpack.c.h.b16 %v715
    %v1210 = vunpack.c.l.b16 %v716
    %v1211 = vunpack.c.h.b16 %v716
    %v1212 = vunpack.c.l.b16 %v717
    %v1213 = vunpack.c.l.b16 %v718
    %v1214 = vunpack.c.h.b16 %v718
    %v1215 = vunpack.c.l.b16 %v719
    %v1216 = vunpack.c.h.b16 %v719
    %v1217 = vunpack.c.l.b16 %v720
    %v1218 = vunpack.c.l.b16 %v721
    %v1219 = vunpack.c.h.b16 %v721
    %v1220 = vunpack.c.l.b16 %v722
    %v1221 = vunpack.c.h.b16 %v722
    %v1222 = vunpack.c.l.b16 %v723
    %v1223 = vunpack.c.l.b16 %v724
    %v1224 = vunpack.c.h.b16 %v724
    %v1225 = vunpack.c.l.b16 %v725
    %v1226 = vunpack.c.h.b16 %v725
    %v1227 = vunpack.c.l.b16 %v726
    %v1228 = vunpack.c.l.b16 %v727
    %v1229 = vunpack.c.h.b16 %v727
    %v1230 = vunpack.c.l.b16 %v728
    %v1231 = vunpack.c.h.b16 %v728
    %v1232 = vunpack.c.l.b16 %v729
    %v1233 = vunpack.c.l.b16 %v730
    %v1234 = vunpack.c.h.b16 %v730
    %v1235 = vunpack.c.l.b16 %v731
    %v1236 = vunpack.c.h.b16 %v731
    %v1237 = vunpack.c.l.b16 %v732
    %v1238 = vunpack.c.l.b16 %v733
    %v1239 = vunpack.c.h.b16 %v733
    %v1240 = vunpack.c.l.b16 %v734
    %v1241 = vunpack.c.h.b16 %v734
    %v1242 = vunpack.c.l.b16 %v735
    %v1243 = vunpack.c.l.b16 %v736
    %v1244 = vunpack.c.h.b16 %v736
    %v1245 = vunpack.c.l.b16 %v737
    %v1246 = vunpack.c.h.b16 %v737
    %v1247 = vunpack.c.l.b16 %v738
    %v1248 = vunpack.c.l.b16 %v739
    %v1249 = vunpack.c.h.b16 %v739
    %v1250 = vunpack.c.l.b16 %v740
    %v1251 = vunpack.c.h.b16 %v740
    %v1252 = vunpack.c.l.b16 %v741
    %v1253 = vunpack.c.l.b16 %v742
    %v1254 = vunpack.c.h.b16 %v742
    %v1255 = vunpack.c.l.b16 %v743
    %v1256 = vunpack.c.h.b16 %v743
    %v1257 = vunpack.c.l.b16 %v744
    %v1258 = vunpack.c.l.b16 %v745
    %v1259 = vunpack.c.h.b16 %v745
    %v1260 = vunpack.c.l.b16 %v746
    %v1261 = vunpack.c.h.b16 %v746
    %v1262 = vunpack.c.l.b16 %v747
    %v1263 = vunpack.c.l.b16 %v748
    %v1264 = vunpack.c.h.b16 %v748
    %v1265 = vunpack.c.l.b16 %v749
    %v1266 = vunpack.c.h.b16 %v749
    %v1267 = vunpack.c.l.b16 %v750
    %v1268 = vunpack.c.l.b16 %v751
    %v1269 = vunpack.c.h.b16 %v751
    %v1270 = vunpack.c.l.b16 %v752
    %v1271 = vunpack.c.h.b16 %v752
    %v1272 = vunpack.c.l.b16 %v753
    %v1273 = vunpack.c.l.b16 %v754
    %v1274 = vunpack.c.h.b16 %v754
    %v1275 = vunpack.c.l.b16 %v755
    %v1276 = vunpack.c.h.b16 %v755
    %v1277 = vunpack.c.l.b16 %v756
    %v1278 = vunpack.c.l.b16 %v757
    %v1279 = vunpack.c.h.b16 %v757
    %v1280 = vunpack.c.l.b16 %v758
    %v1281 = vunpack.c.h.b16 %v758
    %v1282 = vunpack.c.l.b16 %v759
    %v1283 = vunpack.c.l.b16 %v760
    %v1284 = vunpack.c.h.b16 %v760
    %v1285 = vunpack.c.l.b16 %v761
    %v1286 = vunpack.c.h.b16 %v761
    %v1287 = vunpack.c.l.b16 %v762
    %v1288 = vunpack.c.l.b16 %v763
    %v1289 = vunpack.c.h.b16 %v763
    %v1290 = vunpack.c.l.b16 %v764
    %v1291 = vunpack.c.h.b16 %v764
    %v1292 = vunpack.c.l.b16 %v765
    %v1293 = vunpack.c.l.b16 %v766
    %v1294 = vunpack.c.h.b16 %v766
    %v1295 = vunpack.c.l.b16 %v767
    %v1296 = vunpack.c.h.b16 %v767
    %v1297 = vunpack.c.l.b16 %v768
    %v1298 = vunpack.c.l.b16 %v769
    %v1299 = vunpack.c.h.b16 %v769
    %v1300 = vunpack.c.l.b16 %v770
    %v1301 = vunpack.c.h.b16 %v770
    %v1302 = vunpack.c.l.b16 %v771
    %v1303 = vunpack.c.l.b16 %v772
    %v1304 = vunpack.c.h.b16 %v772
    %v1305 = vunpack.c.l.b16 %v773
    %v1306 = vunpack.c.h.b16 %v773
    %v1307 = vunpack.c.l.b16 %v774
    %v1308 = vunpack.c.l.b16 %v775
    %v1309 = vunpack.c.h.b16 %v775
    %v1310 = vunpack.c.l.b16 %v776
    %v1311 = vunpack.c.h.b16 %v776
    %v1312 = vunpack.c.l.b16 %v777
    %v1313 = vunpack.c.l.b16 %v778
    %v1314 = vunpack.c.h.b16 %v778
    %v1315 = vunpack.c.l.b16 %v779
    %v1316 = vunpack.c.h.b16 %v779
    %v1317 = vunpack.c.l.b16 %v780
    %v1318 = vunpack.c.l.b16 %v781
    %v1319 = vunpack.c.h.b16 %v781
    %v1320 = vunpack.c.l.b16 %v782
    %v1321 = vunpack.c.h.b16 %v782
    %v1322 = vunpack.c.l.b16 %v783
    %v1323 = vpack.c.b16 %v1008, %v1003
    %v1324 = vpack.c.b16 %v1009, %v1004
    %v1325 = vpack.c.b16 %v1010, %v1005
    %v1326 = vpack.c.b16 %v1011, %v1006
    %v1327 = vpack.c.b16 %v1012, %v1007
    %v1328 = vpack.c.b16 %v1018, %v1013
    %v1329 = vpack.c.b16 %v1019, %v1014
    %v1330 = vpack.c.b16 %v1020, %v1015
    %v1331 = vpack.c.b16 %v1021, %v1016
    %v1332 = vpack.c.b16 %v1022, %v1017
    %v1333 = vpack.c.b16 %v1028, %v1023
    %v1334 = vpack.c.b16 %v1029, %v1024
    %v1335 = vpack.c.b16 %v1030, %v1025
    %v1336 = vpack.c.b16 %v1031, %v1026
    %v1337 = vpack.c.b16 %v1032, %v1027
    %v1338 = vpack.c.b16 %v1038, %v1033
    %v1339 = vpack.c.b16 %v1039, %v1034
    %v1340 = vpack.c.b16 %v1040, %v1035
    %v1341 = vpack.c.b16 %v1041, %v1036
    %v1342 = vpack.c.b16 %v1042, %v1037
    %v1343 = vpack.c.b16 %v1048, %v1043
    %v1344 = vpack.c.b16 %v1049, %v1044
    %v1345 = vpack.c.b16 %v1050, %v1045
    %v1346 = vpack.c.b16 %v1051, %v1046
    %v1347 = vpack.c.b16 %v1052, %v1047
    %v1348 = vpack.c.b16 %v1058, %v1053
    %v1349 = vpack.c.b16 %v1059, %v1054
    %v1350 = vpack.c.b16 %v1060, %v1055
    %v1351 = vpack.c.b16 %v1061, %v1056
    %v1352 = vpack.c.b16 %v1062, %v1057
    %v1353 = vpack.c.b16 %v1068, %v1063
    %v1354 = vpack.c.b16 %v1069, %v1064
    %v1355 = vpack.c.b16 %v1070, %v1065
    %v1356 = vpack.c.b16 %v1071, %v1066
    %v1357 = vpack.c.b16 %v1072, %v1067
    %v1358 = vpack.c.b16 %v1078, %v1073
    %v1359 = vpack.c.b16 %v1079, %v1074
    %v1360 = vpack.c.b16 %v1080, %v1075
    %v1361 = vpack.c.b16 %v1081, %v1076
    %v1362 = vpack.c.b16 %v1082, %v1077
    %v1363 = vpack.c.b16 %v1088, %v1083
    %v1364 = vpack.c.b16 %v1089, %v1084
    %v1365 = vpack.c.b16 %v1090, %v1085
    %v1366 = vpack.c.b16 %v1091, %v1086
    %v1367 = vpack.c.b16 %v1092, %v1087
    %v1368 = vpack.c.b16 %v1098, %v1093
    %v1369 = vpack.c.b16 %v1099, %v1094
    %v1370 = vpack.c.b16 %v1100, %v1095
    %v1371 = vpack.c.b16 %v1101, %v1096
    %v1372 = vpack.c.b16 %v1102, %v1097
    %v1373 = vpack.c.b16 %v1108, %v1103
    %v1374 = vpack.c.b16 %v1109, %v1104
    %v1375 = vpack.c.b16 %v1110, %v1105
    %v1376 = vpack.c.b16 %v1111, %v1106
    %v1377 = vpack.c.b16 %v1112, %v1107
    %v1378 = vpack.c.b16 %v1118, %v1113
    %v1379 = vpack.c.b16 %v1119, %v1114
    %v1380 = vpack.c.b16 %v1120, %v1115
    %v1381 = vpack.c.b16 %v1121, %v1116
    %v1382 = vpack.c.b16 %v1122, %v1117
    %v1383 = vpack.c.b16 %v1128, %v1123
    %v1384 = vpack.c.b16 %v1129, %v1124
    %v1385 = vpack.c.b16 %v1130, %v1125
    %v1386 = vpack.c.b16 %v1131, %v1126
    %v1387 = vpack.c.b16 %v1132, %v1127
    %v1388 = vpack.c.b16 %v1138, %v1133
    %v1389 = vpack.c.b16 %v1139, %v1134
    %v1390 = vpack.c.b16 %v1140, %v1135
    %v1391 = vpack.c.b16 %v1141, %v1136
    %v1392 = vpack.c.b16 %v1142, %v1137
    %v1393 = vpack.c.b16 %v1148, %v1143
    %v1394 = vpack.c.b16 %v1149, %v1144
    %v1395 = vpack.c.b16 %v1150, %v1145
    %v1396 = vpack.c.b16 %v1151, %v1146
    %v1397 = vpack.c.b16 %v1152, %v1147
    %v1398 = vpack.c.b16 %v1158, %v1153
    %v1399 = vpack.c.b16 %v1159, %v1154
    %v1400 = vpack.c.b16 %v1160, %v1155
    %v1401 = vpack.c.b16 %v1161, %v1156
    %v1402 = vpack.c.b16 %v1162, %v1157
    %v1403 = vpack.c.b16 %v1168, %v1163
    %v1404 = vpack.c.b16 %v1169, %v1164
    %v1405 = vpack.c.b16 %v1170, %v1165
    %v1406 = vpack.c.b16 %v1171, %v1166
    %v1407 = vpack.c.b16 %v1172, %v1167
    %v1408 = vpack.c.b16 %v1178, %v1173
    %v1409 = vpack.c.b16 %v1179, %v1174
    %v1410 = vpack.c.b16 %v1180, %v1175
    %v1411 = vpack.c.b16 %v1181, %v1176
    %v1412 = vpack.c.b16 %v1182, %v1177
    %v1413 = vpack.c.b16 %v1188, %v1183
    %v1414 = vpack.c.b16 %v1189, %v1184
    %v1415 = vpack.c.b16 %v1190, %v1185
    %v1416 = vpack.c.b16 %v1191, %v1186
    %v1417 = vpack.c.b16 %v1192, %v1187
    %v1418 = vpack.c.b16 %v1198, %v1193
    %v1419 = vpack.c.b16 %v1199, %v1194
    %v1420 = vpack.c.b16 %v1200, %v1195
    %v1421 = vpack.c.b16 %v1201, %v1196
    %v1422 = vpack.c.b16 %v1202, %v1197
    %v1423 = vpack.c.b16 %v1208, %v1203
    %v1424 = vpack.c.b16 %v1209, %v1204
    %v1425 = vpack.c.b16 %v1210, %v1205
    %v1426 = vpack.c.b16 %v1211, %v1206
    %v1427 = vpack.c.b16 %v1212, %v1207
    %v1428 = vpack.c.b16 %v1218, %v1213
    %v1429 = vpack.c.b16 %v1219, %v1214
    %v1430 = vpack.c.b16 %v1220, %v1215
    %v1431 = vpack.c.b16 %v1221, %v1216
    %v1432 = vpack.c.b16 %v1222, %v1217
    %v1433 = vpack.c.b16 %v1228, %v1223
    %v1434 = vpack.c.b16 %v1229, %v1224
    %v1435 = vpack.c.b16 %v1230, %v1225
    %v1436 = vpack.c.b16 %v1231, %v1226
    %v1437 = vpack.c.b16 %v1232, %v1227
    %v1438 = vpack.c.b16 %v1238, %v1233
    %v1439 = vpack.c.b16 %v1239, %v1234
    %v1440 = vpack.c.b16 %v1240, %v1235
    %v1441 = vpack.c.b16 %v1241, %v1236
    %v1442 = vpack.c.b16 %v1242, %v1237
    %v1443 = vpack.c.b16 %v1248, %v1243
    %v1444 = vpack.c.b16 %v1249, %v1244
    %v1445 = vpack.c.b16 %v1250, %v1245
    %v1446 = vpack.c.b16 %v1251, %v1246
    %v1447 = vpack.c.b16 %v1252, %v1247
    %v1448 = vpack.c.b16 %v1258, %v1253
    %v1449 = vpack.c.b16 %v1259, %v1254
    %v1450 = vpack.c.b16 %v1260, %v1255
    %v1451 = vpack.c.b16 %v1261, %v1256
    %v1452 = vpack.c.b16 %v1262, %v1257
    %v1453 = vpack.c.b16 %v1268, %v1263
    %v1454 = vpack.c.b16 %v1269, %v1264
    %v1455 = vpack.c.b16 %v1270, %v1265
    %v1456 = vpack.c.b16 %v1271, %v1266
    %v1457 = vpack.c.b16 %v1272, %v1267
    %v1458 = vpack.c.b16 %v1278, %v1273
    %v1459 = vpack.c.b16 %v1279, %v1274
    %v1460 = vpack.c.b16 %v1280, %v1275
    %v1461 = vpack.c.b16 %v1281, %v1276
    %v1462 = vpack.c.b16 %v1282, %v1277
    %v1463 = vpack.c.b16 %v1288, %v1283
    %v1464 = vpack.c.b16 %v1289, %v1284
    %v1465 = vpack.c.b16 %v1290, %v1285
    %v1466 = vpack.c.b16 %v1291, %v1286
    %v1467 = vpack.c.b16 %v1292, %v1287
    %v1468 = vpack.c.b16 %v1298, %v1293
    %v1469 = vpack.c.b16 %v1299, %v1294
    %v1470 = vpack.c.b16 %v1300, %v1295
    %v1471 = vpack.c.b16 %v1301, %v1296
    %v1472 = vpack.c.b16 %v1302, %v1297
    %v1473 = vpack.c.b16 %v1308, %v1303
    %v1474 = vpack.c.b16 %v1309, %v1304
    %v1475 = vpack.c.b16 %v1310, %v1305
    %v1476 = vpack.c.b16 %v1311, %v1306
    %v1477 = vpack.c.b16 %v1312, %v1307
    %v1478 = vpack.c.b16 %v1318, %v1313
    %v1479 = vpack.c.b16 %v1319, %v1314
    %v1480 = vpack.c.b16 %v1320, %v1315
    %v1481 = vpack.c.b16 %v1321, %v1316
    %v1482 = vpack.c.b16 %v1322, %v1317
    %1643 = vmatprep.subr.bf16.mxu0 %v1359
    %1644 = vmatpush1.bf16.msra.mxu0 %v1358
    %1645 = vmatprep.subr.bf16.mxu0 %v1354
    %1646 = vmatpush1.bf16.msra.mxu0 %v1353
    %1647 = vmatprep.subr.bf16.mxu0 %v1349
    %1648 = vmatpush1.bf16.msra.mxu0 %v1348
    %1649 = vmatprep.subr.bf16.mxu0 %v1344
    %1650 = vmatpush1.bf16.msra.mxu0 %v1343
    %1651 = vmatprep.subr.bf16.mxu0 %v1339
    %1652 = vmatpush1.bf16.msra.mxu0 %v1338
    %1653 = vmatprep.subr.bf16.mxu0 %v1334
    %1654 = vmatpush1.bf16.msra.mxu0 %v1333
    %1655 = vmatprep.subr.bf16.mxu0 %v1329
    %1656 = vmatpush1.bf16.msra.mxu0 %v1328
    %1657 = vmatprep.subr.bf16.mxu0 %v1324
    %1658 = vmatpush1.bf16.msra.mxu0 %v1323
    %1659 = vmatprep.subr.bf16.mxu0 %v1399
    %1660 = vmatpush2.bf16.msra.mxu0 %v1398
    %1661 = vmatprep.subr.bf16.mxu0 %v1394
    %1662 = vmatpush2.bf16.msra.mxu0 %v1393
    %1663 = vmatprep.subr.bf16.mxu0 %v1389
    %1664 = vmatpush2.bf16.msra.mxu0 %v1388
    %1665 = vmatprep.subr.bf16.mxu0 %v1384
    %1666 = vmatpush2.bf16.msra.mxu0 %v1383
    %1667 = vmatprep.subr.bf16.mxu0 %v1379
    %1668 = vmatpush2.bf16.msra.mxu0 %v1378
    %1669 = vmatprep.subr.bf16.mxu0 %v1374
    %1670 = vmatpush2.bf16.msra.mxu0 %v1373
    %1671 = vmatprep.subr.bf16.mxu0 %v1369
    %1672 = vmatpush2.bf16.msra.mxu0 %v1368
    %1673 = vmatprep.subr.bf16.mxu0 %v1364
    %1674 = vmatpush2.bf16.msra.mxu0 %v1363
    %1675 = vmatprep.mubr.bf16.mxu0 %v589
    %1676 = vmatmul.mubr.bf16.gmra.mxu0 %v588
    %v1677 = vpop.f32.mrf.mxu0
    %v1678 = vadd.f32 %v789, %v1677
    %v1679 = vpop.f32.mrf.mxu0
    %v1680 = vadd.f32 %v793, %v1679
    %v1681 = vpop.f32.mrf.mxu0
    %v1682 = vpop.f32.mrf.mxu0
    %1683 = vdwg.mxu0
    %1684 = vmatprep.subr.bf16.mxu0 %v1439
    %1685 = vmatpush1.bf16.msra.mxu0 %v1438
    %1686 = vmatprep.subr.bf16.mxu0 %v1434
    %1687 = vmatpush1.bf16.msra.mxu0 %v1433
    %1688 = vmatprep.subr.bf16.mxu0 %v1429
    %1689 = vmatpush1.bf16.msra.mxu0 %v1428
    %1690 = vmatprep.subr.bf16.mxu0 %v1424
    %1691 = vmatpush1.bf16.msra.mxu0 %v1423
    %1692 = vmatprep.subr.bf16.mxu0 %v1419
    %1693 = vmatpush1.bf16.msra.mxu0 %v1418
    %1694 = vmatprep.subr.bf16.mxu0 %v1414
    %1695 = vmatpush1.bf16.msra.mxu0 %v1413
    %1696 = vmatprep.subr.bf16.mxu0 %v1409
    %1697 = vmatpush1.bf16.msra.mxu0 %v1408
    %1698 = vmatprep.subr.bf16.mxu0 %v1404
    %1699 = vmatpush1.bf16.msra.mxu0 %v1403
    %1700 = vmatprep.subr.bf16.mxu0 %v1479
    %1701 = vmatpush2.bf16.msra.mxu0 %v1478
    %1702 = vmatprep.subr.bf16.mxu0 %v1474
    %1703 = vmatpush2.bf16.msra.mxu0 %v1473
    %1704 = vmatprep.subr.bf16.mxu0 %v1469
    %1705 = vmatpush2.bf16.msra.mxu0 %v1468
    %1706 = vmatprep.subr.bf16.mxu0 %v1464
    %1707 = vmatpush2.bf16.msra.mxu0 %v1463
    %1708 = vmatprep.subr.bf16.mxu0 %v1459
    %1709 = vmatpush2.bf16.msra.mxu0 %v1458
    %1710 = vmatprep.subr.bf16.mxu0 %v1454
    %1711 = vmatpush2.bf16.msra.mxu0 %v1453
    %1712 = vmatprep.subr.bf16.mxu0 %v1449
    %1713 = vmatpush2.bf16.msra.mxu0 %v1448
    %1714 = vmatprep.subr.bf16.mxu0 %v1444
    %1715 = vmatpush2.bf16.msra.mxu0 %v1443
    %1716 = vmatprep.mubr.bf16.mxu0 %v591
    %1717 = vmatmul.mubr.bf16.gmra.mxu0 %v590
    %v1718 = vpop.f32.mrf.mxu0
    %v1719 = vadd.f32 %v1678, %v1718
    %v1720 = vpop.f32.mrf.mxu0
    %v1721 = vadd.f32 %v1680, %v1720
    %v1722 = vpop.f32.mrf.mxu0
    %v1723 = vpop.f32.mrf.mxu0
    %1724 = vdwg.mxu0
    %1725 = vmatprep.subr.bf16.mxu0 %v1361
    %1726 = vmatpush1.bf16.msra.mxu0 %v1360
    %1727 = vmatprep.subr.bf16.mxu0 %v1356
    %1728 = vmatpush1.bf16.msra.mxu0 %v1355
    %1729 = vmatprep.subr.bf16.mxu0 %v1351
    %1730 = vmatpush1.bf16.msra.mxu0 %v1350
    %1731 = vmatprep.subr.bf16.mxu0 %v1346
    %1732 = vmatpush1.bf16.msra.mxu0 %v1345
    %1733 = vmatprep.subr.bf16.mxu0 %v1341
    %1734 = vmatpush1.bf16.msra.mxu0 %v1340
    %1735 = vmatprep.subr.bf16.mxu0 %v1336
    %1736 = vmatpush1.bf16.msra.mxu0 %v1335
    %1737 = vmatprep.subr.bf16.mxu0 %v1331
    %1738 = vmatpush1.bf16.msra.mxu0 %v1330
    %1739 = vmatprep.subr.bf16.mxu0 %v1326
    %1740 = vmatpush1.bf16.msra.mxu0 %v1325
    %1741 = vmatprep.subr.bf16.mxu0 %v1401
    %1742 = vmatpush2.bf16.msra.mxu0 %v1400
    %1743 = vmatprep.subr.bf16.mxu0 %v1396
    %1744 = vmatpush2.bf16.msra.mxu0 %v1395
    %1745 = vmatprep.subr.bf16.mxu0 %v1391
    %1746 = vmatpush2.bf16.msra.mxu0 %v1390
    %1747 = vmatprep.subr.bf16.mxu0 %v1386
    %1748 = vmatpush2.bf16.msra.mxu0 %v1385
    %1749 = vmatprep.subr.bf16.mxu0 %v1381
    %1750 = vmatpush2.bf16.msra.mxu0 %v1380
    %1751 = vmatprep.subr.bf16.mxu0 %v1376
    %1752 = vmatpush2.bf16.msra.mxu0 %v1375
    %1753 = vmatprep.subr.bf16.mxu0 %v1371
    %1754 = vmatpush2.bf16.msra.mxu0 %v1370
    %1755 = vmatprep.subr.bf16.mxu0 %v1366
    %1756 = vmatpush2.bf16.msra.mxu0 %v1365
    %1757 = vmatprep.mubr.bf16.mxu0 %v589
    %1758 = vmatmul.mubr.bf16.gmra.mxu0 %v588
    %v1759 = vpop.f32.mrf.mxu0
    %v1760 = vadd.f32 %v797, %v1759
    %v1761 = vpop.f32.mrf.mxu0
    %v1762 = vadd.f32 %v801, %v1761
    %v1763 = vpop.f32.mrf.mxu0
    %v1764 = vpop.f32.mrf.mxu0
    %1765 = vdwg.mxu0
    %1766 = vmatprep.subr.bf16.mxu0 %v1441
    %1767 = vmatpush1.bf16.msra.mxu0 %v1440
    %1768 = vmatprep.subr.bf16.mxu0 %v1436
    %1769 = vmatpush1.bf16.msra.mxu0 %v1435
    %1770 = vmatprep.subr.bf16.mxu0 %v1431
    %1771 = vmatpush1.bf16.msra.mxu0 %v1430
    %1772 = vmatprep.subr.bf16.mxu0 %v1426
    %1773 = vmatpush1.bf16.msra.mxu0 %v1425
    %1774 = vmatprep.subr.bf16.mxu0 %v1421
    %1775 = vmatpush1.bf16.msra.mxu0 %v1420
    %1776 = vmatprep.subr.bf16.mxu0 %v1416
    %1777 = vmatpush1.bf16.msra.mxu0 %v1415
    %1778 = vmatprep.subr.bf16.mxu0 %v1411
    %1779 = vmatpush1.bf16.msra.mxu0 %v1410
    %1780 = vmatprep.subr.bf16.mxu0 %v1406
    %1781 = vmatpush1.bf16.msra.mxu0 %v1405
    %1782 = vmatprep.subr.bf16.mxu0 %v1481
    %1783 = vmatpush2.bf16.msra.mxu0 %v1480
    %1784 = vmatprep.subr.bf16.mxu0 %v1476
    %1785 = vmatpush2.bf16.msra.mxu0 %v1475
    %1786 = vmatprep.subr.bf16.mxu0 %v1471
    %1787 = vmatpush2.bf16.msra.mxu0 %v1470
    %1788 = vmatprep.subr.bf16.mxu0 %v1466
    %1789 = vmatpush2.bf16.msra.mxu0 %v1465
    %1790 = vmatprep.subr.bf16.mxu0 %v1461
    %1791 = vmatpush2.bf16.msra.mxu0 %v1460
    %1792 = vmatprep.subr.bf16.mxu0 %v1456
    %1793 = vmatpush2.bf16.msra.mxu0 %v1455
    %1794 = vmatprep.subr.bf16.mxu0 %v1451
    %1795 = vmatpush2.bf16.msra.mxu0 %v1450
    %1796 = vmatprep.subr.bf16.mxu0 %v1446
    %1797 = vmatpush2.bf16.msra.mxu0 %v1445
    %1798 = vmatprep.mubr.bf16.mxu0 %v591
    %1799 = vmatmul.mubr.bf16.gmra.mxu0 %v590
    %v1800 = vpop.f32.mrf.mxu0
    %v1801 = vadd.f32 %v1760, %v1800
    %v1802 = vpop.f32.mrf.mxu0
    %v1803 = vadd.f32 %v1762, %v1802
    %v1804 = vpop.f32.mrf.mxu0
    %v1805 = vpop.f32.mrf.mxu0
    %1806 = vdwg.mxu0
    %1807 = vmatprep.subr.bf16.mxu0 0
    %1808 = vmatpush1.bf16.msra.mxu0 %v1362
    %1809 = vmatprep.subr.bf16.mxu0 0
    %1810 = vmatpush1.bf16.msra.mxu0 %v1357
    %1811 = vmatprep.subr.bf16.mxu0 0
    %1812 = vmatpush1.bf16.msra.mxu0 %v1352
    %1813 = vmatprep.subr.bf16.mxu0 0
    %1814 = vmatpush1.bf16.msra.mxu0 %v1347
    %1815 = vmatprep.subr.bf16.mxu0 0
    %1816 = vmatpush1.bf16.msra.mxu0 %v1342
    %1817 = vmatprep.subr.bf16.mxu0 0
    %1818 = vmatpush1.bf16.msra.mxu0 %v1337
    %1819 = vmatprep.subr.bf16.mxu0 0
    %1820 = vmatpush1.bf16.msra.mxu0 %v1332
    %1821 = vmatprep.subr.bf16.mxu0 0
    %1822 = vmatpush1.bf16.msra.mxu0 %v1327
    %1823 = vmatprep.subr.bf16.mxu0 0
    %1824 = vmatpush2.bf16.msra.mxu0 %v1402
    %1825 = vmatprep.subr.bf16.mxu0 0
    %1826 = vmatpush2.bf16.msra.mxu0 %v1397
    %1827 = vmatprep.subr.bf16.mxu0 0
    %1828 = vmatpush2.bf16.msra.mxu0 %v1392
    %1829 = vmatprep.subr.bf16.mxu0 0
    %1830 = vmatpush2.bf16.msra.mxu0 %v1387
    %1831 = vmatprep.subr.bf16.mxu0 0
    %1832 = vmatpush2.bf16.msra.mxu0 %v1382
    %1833 = vmatprep.subr.bf16.mxu0 0
    %1834 = vmatpush2.bf16.msra.mxu0 %v1377
    %1835 = vmatprep.subr.bf16.mxu0 0
    %1836 = vmatpush2.bf16.msra.mxu0 %v1372
    %1837 = vmatprep.subr.bf16.mxu0 0
    %1838 = vmatpush2.bf16.msra.mxu0 %v1367
    %1839 = vmatprep.mubr.bf16.mxu0 %v589
    %1840 = vmatmul.mubr.bf16.gmra.mxu0 %v588
    %v1841 = vpop.f32.mrf.mxu0
    %v1842 = vadd.f32 %v805, %v1841
    %v1843 = vpop.f32.mrf.mxu0
    %v1844 = vpop.f32.mrf.mxu0
    %v1845 = vpop.f32.mrf.mxu0
    %1846 = vdwg.mxu0
    %1847 = vmatprep.subr.bf16.mxu0 0
    %1848 = vmatpush1.bf16.msra.mxu0 %v1442
    %1849 = vmatprep.subr.bf16.mxu0 0
    %1850 = vmatpush1.bf16.msra.mxu0 %v1437
    %1851 = vmatprep.subr.bf16.mxu0 0
    %1852 = vmatpush1.bf16.msra.mxu0 %v1432
    %1853 = vmatprep.subr.bf16.mxu0 0
    %1854 = vmatpush1.bf16.msra.mxu0 %v1427
    %1855 = vmatprep.subr.bf16.mxu0 0
    %1856 = vmatpush1.bf16.msra.mxu0 %v1422
    %1857 = vmatprep.subr.bf16.mxu0 0
    %1858 = vmatpush1.bf16.msra.mxu0 %v1417
    %1859 = vmatprep.subr.bf16.mxu0 0
    %1860 = vmatpush1.bf16.msra.mxu0 %v1412
    %1861 = vmatprep.subr.bf16.mxu0 0
    %1862 = vmatpush1.bf16.msra.mxu0 %v1407
    %1863 = vmatprep.subr.bf16.mxu0 0
    %1864 = vmatpush2.bf16.msra.mxu0 %v1482
    %1865 = vmatprep.subr.bf16.mxu0 0
    %1866 = vmatpush2.bf16.msra.mxu0 %v1477
    %1867 = vmatprep.subr.bf16.mxu0 0
    %1868 = vmatpush2.bf16.msra.mxu0 %v1472
    %1869 = vmatprep.subr.bf16.mxu0 0
    %1870 = vmatpush2.bf16.msra.mxu0 %v1467
    %1871 = vmatprep.subr.bf16.mxu0 0
    %1872 = vmatpush2.bf16.msra.mxu0 %v1462
    %1873 = vmatprep.subr.bf16.mxu0 0
    %1874 = vmatpush2.bf16.msra.mxu0 %v1457
    %1875 = vmatprep.subr.bf16.mxu0 0
    %1876 = vmatpush2.bf16.msra.mxu0 %v1452
    %1877 = vmatprep.subr.bf16.mxu0 0
    %1878 = vmatpush2.bf16.msra.mxu0 %v1447
    %1879 = vmatprep.mubr.bf16.mxu0 %v591
    %1880 = vmatmul.mubr.bf16.gmra.mxu0 %v590
    %v1881 = vpop.f32.mrf.mxu0
    %v1882 = vadd.f32 %v1842, %v1881
    %v1883 = vpop.f32.mrf.mxu0
    %v1884 = vpop.f32.mrf.mxu0
    %v1885 = vpop.f32.mrf.mxu0
    %1886 = vdwg.mxu0
    %v1887 = vmax.f32 %v1719, 0.0
    %v1888 = vmax.f32 %v1721, 0.0
    %v1889 = vmax.f32 %v1801, 0.0
    %v1890 = vmax.f32 %v1803, 0.0
    %v1891 = vmax.f32 %v1882, 0.0
    %v1892 = vpack.c.bf16 %v1887, %v1887
    %v1893 = vpack.c.bf16 %v1888, %v1888
    %v1894 = vpack.c.bf16 %v1889, %v1889
    %v1895 = vpack.c.bf16 %v1890, %v1890
    %v1896 = vpack.c.bf16 %v1891, %v1891
    %v1897 = vld [vmem:[#allocation10] sm:$0xf]
    %v1898 = vld [vmem:[#allocation10 + $0x4] sm:$0xf]
    %v1899 = vld [vmem:[#allocation10 + $0x8] sm:$0xf]
    %v1900 = vld [vmem:[#allocation10 + $0xc] sm:$0xf]
    %v1901 = vld [vmem:[#allocation10 + $0x10] sm:$0xf]
    %v1902 = vld [vmem:[#allocation10 + $0x14] sm:$0xf]
    %v1903 = vld [vmem:[#allocation10 + $0x18] sm:$0xf]
    %v1904 = vld [vmem:[#allocation10 + $0x1c] sm:$0xf]
    %v1905 = vld [vmem:[#allocation10 + $0x20] sm:$0xf]
    %v1906 = vld [vmem:[#allocation10 + $0x24] sm:$0xf]
    %v1907 = vld [vmem:[#allocation10 + $0x28] sm:$0xf]
    %v1908 = vld [vmem:[#allocation10 + $0x2c] sm:$0xf]
    %v1909 = vld [vmem:[#allocation10 + $0x30] sm:$0xf]
    %v1910 = vld [vmem:[#allocation10 + $0x34] sm:$0xf]
    %v1911 = vld [vmem:[#allocation10 + $0x38] sm:$0xf]
    %v1912 = vld [vmem:[#allocation10 + $0x3c] sm:$0xf]
    %v1913 = vld [vmem:[#allocation10 + $0x40] sm:$0xf]
    %v1914 = vld [vmem:[#allocation10 + $0x44] sm:$0xf]
    %v1915 = vld [vmem:[#allocation10 + $0x48] sm:$0xf]
    %v1916 = vld [vmem:[#allocation10 + $0x4c] sm:$0xf]
    %v1917 = vld [vmem:[#allocation10 + $0x50] sm:$0xf]
    %v1918 = vld [vmem:[#allocation10 + $0x54] sm:$0xf]
    %v1919 = vld [vmem:[#allocation10 + $0x58] sm:$0xf]
    %v1920 = vld [vmem:[#allocation10 + $0x5c] sm:$0xf]
    %v1921 = vld [vmem:[#allocation10 + $0x60] sm:$0xf]
    %v1922 = vld [vmem:[#allocation10 + $0x64] sm:$0xf]
    %v1923 = vld [vmem:[#allocation10 + $0x68] sm:$0xf]
    %v1924 = vld [vmem:[#allocation10 + $0x6c] sm:$0xf]
    %v1925 = vld [vmem:[#allocation10 + $0x70] sm:$0xf]
    %v1926 = vld [vmem:[#allocation10 + $0x74] sm:$0xf]
    %v1927 = vld [vmem:[#allocation10 + $0x78] sm:$0xf]
    %v1928 = vld [vmem:[#allocation10 + $0x7c] sm:$0xf]
    %v1929 = vld [vmem:[#allocation10 + $0x80] sm:$0xf]
    %v1930 = vld [vmem:[#allocation10 + $0x84] sm:$0xf]
    %v1931 = vld [vmem:[#allocation10 + $0x88] sm:$0xf]
    %v1932 = vld [vmem:[#allocation10 + $0x8c] sm:$0xf]
    %v1933 = vld [vmem:[#allocation10 + $0x90] sm:$0xf]
    %v1934 = vld [vmem:[#allocation10 + $0x94] sm:$0xf]
    %v1935 = vld [vmem:[#allocation10 + $0x98] sm:$0xf]
    %v1936 = vld [vmem:[#allocation10 + $0x9c] sm:$0xf]
    %v1937 = vld [vmem:[#allocation10 + $0xa0] sm:$0xf]
    %v1938 = vld [vmem:[#allocation10 + $0xa4] sm:$0xf]
    %v1939 = vld [vmem:[#allocation10 + $0xa8] sm:$0xf]
    %v1940 = vld [vmem:[#allocation10 + $0xac] sm:$0xf]
    %v1941 = vld [vmem:[#allocation10 + $0xb0] sm:$0xf]
    %v1942 = vld [vmem:[#allocation10 + $0xb4] sm:$0xf]
    %v1943 = vld [vmem:[#allocation10 + $0xb8] sm:$0xf]
    %v1944 = vld [vmem:[#allocation10 + $0xbc] sm:$0xf]
    %v1945 = vld [vmem:[#allocation10 + $0xc0] sm:$0xf]
    %v1946 = vld [vmem:[#allocation10 + $0xc4] sm:$0xf]
    %v1947 = vld [vmem:[#allocation10 + $0xc8] sm:$0xf]
    %v1948 = vld [vmem:[#allocation10 + $0xcc] sm:$0xf]
    %v1949 = vld [vmem:[#allocation10 + $0xd0] sm:$0xf]
    %v1950 = vld [vmem:[#allocation10 + $0xd4] sm:$0xf]
    %v1951 = vld [vmem:[#allocation10 + $0xd8] sm:$0xf]
    %v1952 = vld [vmem:[#allocation10 + $0xdc] sm:$0xf]
    %v1953 = vld [vmem:[#allocation10 + $0xe0] sm:$0xf]
    %v1954 = vld [vmem:[#allocation10 + $0xe4] sm:$0xf]
    %v1955 = vld [vmem:[#allocation10 + $0xe8] sm:$0xf]
    %v1956 = vld [vmem:[#allocation10 + $0xec] sm:$0xf]
    %v1957 = vld [vmem:[#allocation10 + $0xf0] sm:$0xf]
    %v1958 = vld [vmem:[#allocation10 + $0xf4] sm:$0xf]
    %v1959 = vld [vmem:[#allocation10 + $0xf8] sm:$0xf]
    %v1960 = vld [vmem:[#allocation10 + $0xfc] sm:$0xf]
    %v1961 = vld [vmem:[#allocation10 + $0x100] sm:$0xf]
    %v1962 = vld [vmem:[#allocation10 + $0x104] sm:$0xf]
    %v1963 = vld [vmem:[#allocation10 + $0x108] sm:$0xf]
    %v1964 = vld [vmem:[#allocation10 + $0x10c] sm:$0xf]
    %v1965 = vld [vmem:[#allocation10 + $0x110] sm:$0xf]
    %v1966 = vld [vmem:[#allocation10 + $0x114] sm:$0xf]
    %v1967 = vld [vmem:[#allocation10 + $0x118] sm:$0xf]
    %v1968 = vld [vmem:[#allocation10 + $0x11c] sm:$0xf]
    %v1969 = vld [vmem:[#allocation10 + $0x120] sm:$0xf]
    %v1970 = vld [vmem:[#allocation10 + $0x124] sm:$0xf]
    %v1971 = vld [vmem:[#allocation10 + $0x128] sm:$0xf]
    %v1972 = vld [vmem:[#allocation10 + $0x12c] sm:$0xf]
    %v1973 = vld [vmem:[#allocation10 + $0x130] sm:$0xf]
    %v1974 = vld [vmem:[#allocation10 + $0x134] sm:$0xf]
    %v1975 = vld [vmem:[#allocation10 + $0x138] sm:$0xf]
    %v1976 = vld [vmem:[#allocation10 + $0x13c] sm:$0xf]
    %v1977 = vld [vmem:[%s6] sm:$0x1]
    %v1979 = vlaneseq
    %v1980 = vshrl.u32 %v1979, 7
    %v1981 = vsub.s32 0, %v1980
    %v1982 = vrot.slane %v1977, %v1981
    %v2064 = vunpack.c.l.b16 %v1897
    %v2065 = vunpack.c.l.b16 %v1898
    %v2066 = vunpack.c.l.b16 %v1899
    %v2067 = vunpack.c.l.b16 %v1900
    %v2068 = vunpack.c.l.b16 %v1901
    %v2069 = vunpack.c.l.b16 %v1902
    %v2070 = vunpack.c.l.b16 %v1903
    %v2071 = vunpack.c.l.b16 %v1904
    %v2072 = vunpack.c.l.b16 %v1905
    %v2073 = vunpack.c.l.b16 %v1906
    %v2074 = vunpack.c.l.b16 %v1907
    %v2075 = vunpack.c.l.b16 %v1908
    %v2076 = vunpack.c.l.b16 %v1909
    %v2077 = vunpack.c.l.b16 %v1910
    %v2078 = vunpack.c.l.b16 %v1911
    %v2079 = vunpack.c.l.b16 %v1912
    %v2080 = vunpack.c.l.b16 %v1913
    %v2081 = vunpack.c.l.b16 %v1914
    %v2082 = vunpack.c.l.b16 %v1915
    %v2083 = vunpack.c.l.b16 %v1916
    %v2084 = vunpack.c.l.b16 %v1917
    %v2085 = vunpack.c.l.b16 %v1918
    %v2086 = vunpack.c.l.b16 %v1919
    %v2087 = vunpack.c.l.b16 %v1920
    %v2088 = vunpack.c.l.b16 %v1921
    %v2089 = vunpack.c.l.b16 %v1922
    %v2090 = vunpack.c.l.b16 %v1923
    %v2091 = vunpack.c.l.b16 %v1924
    %v2092 = vunpack.c.l.b16 %v1925
    %v2093 = vunpack.c.l.b16 %v1926
    %v2094 = vunpack.c.l.b16 %v1927
    %v2095 = vunpack.c.l.b16 %v1928
    %v2096 = vunpack.c.l.b16 %v1929
    %v2097 = vunpack.c.l.b16 %v1930
    %v2098 = vunpack.c.l.b16 %v1931
    %v2099 = vunpack.c.l.b16 %v1932
    %v2100 = vunpack.c.l.b16 %v1933
    %v2101 = vunpack.c.l.b16 %v1934
    %v2102 = vunpack.c.l.b16 %v1935
    %v2103 = vunpack.c.l.b16 %v1936
    %v2104 = vunpack.c.l.b16 %v1937
    %v2105 = vunpack.c.l.b16 %v1938
    %v2106 = vunpack.c.l.b16 %v1939
    %v2107 = vunpack.c.l.b16 %v1940
    %v2108 = vunpack.c.l.b16 %v1941
    %v2109 = vunpack.c.l.b16 %v1942
    %v2110 = vunpack.c.l.b16 %v1943
    %v2111 = vunpack.c.l.b16 %v1944
    %v2112 = vunpack.c.l.b16 %v1945
    %v2113 = vunpack.c.l.b16 %v1946
    %v2114 = vunpack.c.l.b16 %v1947
    %v2115 = vunpack.c.l.b16 %v1948
    %v2116 = vunpack.c.l.b16 %v1949
    %v2117 = vunpack.c.l.b16 %v1950
    %v2118 = vunpack.c.l.b16 %v1951
    %v2119 = vunpack.c.l.b16 %v1952
    %v2120 = vunpack.c.l.b16 %v1953
    %v2121 = vunpack.c.l.b16 %v1954
    %v2122 = vunpack.c.l.b16 %v1955
    %v2123 = vunpack.c.l.b16 %v1956
    %v2124 = vunpack.c.l.b16 %v1957
    %v2125 = vunpack.c.l.b16 %v1958
    %v2126 = vunpack.c.l.b16 %v1959
    %v2127 = vunpack.c.l.b16 %v1960
    %v2128 = vunpack.c.l.b16 %v1961
    %v2129 = vunpack.c.l.b16 %v1962
    %v2130 = vunpack.c.l.b16 %v1963
    %v2131 = vunpack.c.l.b16 %v1964
    %v2132 = vunpack.c.l.b16 %v1965
    %v2133 = vunpack.c.l.b16 %v1966
    %v2134 = vunpack.c.l.b16 %v1967
    %v2135 = vunpack.c.l.b16 %v1968
    %v2136 = vunpack.c.l.b16 %v1969
    %v2137 = vunpack.c.l.b16 %v1970
    %v2138 = vunpack.c.l.b16 %v1971
    %v2139 = vunpack.c.l.b16 %v1972
    %v2140 = vunpack.c.l.b16 %v1973
    %v2141 = vunpack.c.l.b16 %v1974
    %v2142 = vunpack.c.l.b16 %v1975
    %v2143 = vunpack.c.l.b16 %v1976
    %v2144 = vpack.c.b16 %v2065, %v2064
    %v2145 = vpack.c.b16 %v2067, %v2066
    %v2146 = vpack.c.b16 %v2069, %v2068
    %v2147 = vpack.c.b16 %v2071, %v2070
    %v2148 = vpack.c.b16 %v2073, %v2072
    %v2149 = vpack.c.b16 %v2075, %v2074
    %v2150 = vpack.c.b16 %v2077, %v2076
    %v2151 = vpack.c.b16 %v2079, %v2078
    %v2152 = vpack.c.b16 %v2081, %v2080
    %v2153 = vpack.c.b16 %v2083, %v2082
    %v2154 = vpack.c.b16 %v2085, %v2084
    %v2155 = vpack.c.b16 %v2087, %v2086
    %v2156 = vpack.c.b16 %v2089, %v2088
    %v2157 = vpack.c.b16 %v2091, %v2090
    %v2158 = vpack.c.b16 %v2093, %v2092
    %v2159 = vpack.c.b16 %v2095, %v2094
    %v2160 = vpack.c.b16 %v2097, %v2096
    %v2161 = vpack.c.b16 %v2099, %v2098
    %v2162 = vpack.c.b16 %v2101, %v2100
    %v2163 = vpack.c.b16 %v2103, %v2102
    %v2164 = vpack.c.b16 %v2105, %v2104
    %v2165 = vpack.c.b16 %v2107, %v2106
    %v2166 = vpack.c.b16 %v2109, %v2108
    %v2167 = vpack.c.b16 %v2111, %v2110
    %v2168 = vpack.c.b16 %v2113, %v2112
    %v2169 = vpack.c.b16 %v2115, %v2114
    %v2170 = vpack.c.b16 %v2117, %v2116
    %v2171 = vpack.c.b16 %v2119, %v2118
    %v2172 = vpack.c.b16 %v2121, %v2120
    %v2173 = vpack.c.b16 %v2123, %v2122
    %v2174 = vpack.c.b16 %v2125, %v2124
    %v2175 = vpack.c.b16 %v2127, %v2126
    %v2176 = vpack.c.b16 %v2129, %v2128
    %v2177 = vpack.c.b16 %v2131, %v2130
    %v2178 = vpack.c.b16 %v2133, %v2132
    %v2179 = vpack.c.b16 %v2135, %v2134
    %v2180 = vpack.c.b16 %v2137, %v2136
    %v2181 = vpack.c.b16 %v2139, %v2138
    %v2182 = vpack.c.b16 %v2141, %v2140
    %v2183 = vpack.c.b16 %v2143, %v2142
    %2224 = vmatprep.subr.bf16.mxu0 0
    %2225 = vmatpush1.bf16.msra.mxu0 %v2151
    %2226 = vmatprep.subr.bf16.mxu0 0
    %2227 = vmatpush1.bf16.msra.mxu0 %v2150
    %2228 = vmatprep.subr.bf16.mxu0 0
    %2229 = vmatpush1.bf16.msra.mxu0 %v2149
    %2230 = vmatprep.subr.bf16.mxu0 0
    %2231 = vmatpush1.bf16.msra.mxu0 %v2148
    %2232 = vmatprep.subr.bf16.mxu0 0
    %2233 = vmatpush1.bf16.msra.mxu0 %v2147
    %2234 = vmatprep.subr.bf16.mxu0 0
    %2235 = vmatpush1.bf16.msra.mxu0 %v2146
    %2236 = vmatprep.subr.bf16.mxu0 0
    %2237 = vmatpush1.bf16.msra.mxu0 %v2145
    %2238 = vmatprep.subr.bf16.mxu0 0
    %2239 = vmatpush1.bf16.msra.mxu0 %v2144
    %2240 = vmatprep.subr.bf16.mxu0 0
    %2241 = vmatpush2.bf16.msra.mxu0 %v2159
    %2242 = vmatprep.subr.bf16.mxu0 0
    %2243 = vmatpush2.bf16.msra.mxu0 %v2158
    %2244 = vmatprep.subr.bf16.mxu0 0
    %2245 = vmatpush2.bf16.msra.mxu0 %v2157
    %2246 = vmatprep.subr.bf16.mxu0 0
    %2247 = vmatpush2.bf16.msra.mxu0 %v2156
    %2248 = vmatprep.subr.bf16.mxu0 0
    %2249 = vmatpush2.bf16.msra.mxu0 %v2155
    %2250 = vmatprep.subr.bf16.mxu0 0
    %2251 = vmatpush2.bf16.msra.mxu0 %v2154
    %2252 = vmatprep.subr.bf16.mxu0 0
    %2253 = vmatpush2.bf16.msra.mxu0 %v2153
    %2254 = vmatprep.subr.bf16.mxu0 0
    %2255 = vmatpush2.bf16.msra.mxu0 %v2152
    %2256 = vmatprep.mubr.bf16.mxu0 %v1893
    %2257 = vmatmul.mubr.bf16.gmra.mxu0 %v1892
    %v2258 = vpop.f32.mrf.mxu0
    %v2259 = vadd.f32 %v1982, %v2258
    %v2260 = vpop.f32.mrf.mxu0
    %v2261 = vpop.f32.mrf.mxu0
    %v2262 = vpop.f32.mrf.mxu0
    %2263 = vdwg.mxu0
    %2264 = vmatprep.subr.bf16.mxu0 0
    %2265 = vmatpush1.bf16.msra.mxu0 %v2167
    %2266 = vmatprep.subr.bf16.mxu0 0
    %2267 = vmatpush1.bf16.msra.mxu0 %v2166
    %2268 = vmatprep.subr.bf16.mxu0 0
    %2269 = vmatpush1.bf16.msra.mxu0 %v2165
    %2270 = vmatprep.subr.bf16.mxu0 0
    %2271 = vmatpush1.bf16.msra.mxu0 %v2164
    %2272 = vmatprep.subr.bf16.mxu0 0
    %2273 = vmatpush1.bf16.msra.mxu0 %v2163
    %2274 = vmatprep.subr.bf16.mxu0 0
    %2275 = vmatpush1.bf16.msra.mxu0 %v2162
    %2276 = vmatprep.subr.bf16.mxu0 0
    %2277 = vmatpush1.bf16.msra.mxu0 %v2161
    %2278 = vmatprep.subr.bf16.mxu0 0
    %2279 = vmatpush1.bf16.msra.mxu0 %v2160
    %2280 = vmatprep.subr.bf16.mxu0 0
    %2281 = vmatpush2.bf16.msra.mxu0 %v2175
    %2282 = vmatprep.subr.bf16.mxu0 0
    %2283 = vmatpush2.bf16.msra.mxu0 %v2174
    %2284 = vmatprep.subr.bf16.mxu0 0
    %2285 = vmatpush2.bf16.msra.mxu0 %v2173
    %2286 = vmatprep.subr.bf16.mxu0 0
    %2287 = vmatpush2.bf16.msra.mxu0 %v2172
    %2288 = vmatprep.subr.bf16.mxu0 0
    %2289 = vmatpush2.bf16.msra.mxu0 %v2171
    %2290 = vmatprep.subr.bf16.mxu0 0
    %2291 = vmatpush2.bf16.msra.mxu0 %v2170
    %2292 = vmatprep.subr.bf16.mxu0 0
    %2293 = vmatpush2.bf16.msra.mxu0 %v2169
    %2294 = vmatprep.subr.bf16.mxu0 0
    %2295 = vmatpush2.bf16.msra.mxu0 %v2168
    %2296 = vmatprep.mubr.bf16.mxu0 %v1895
    %2297 = vmatmul.mubr.bf16.gmra.mxu0 %v1894
    %v2298 = vpop.f32.mrf.mxu0
    %v2299 = vadd.f32 %v2259, %v2298
    %v2300 = vpop.f32.mrf.mxu0
    %v2301 = vpop.f32.mrf.mxu0
    %v2302 = vpop.f32.mrf.mxu0
    %2303 = vdwg.mxu0
    %2304 = vmatprep.subr.bf16.mxu0 0
    %2305 = vmatpush1.bf16.msra.mxu0 %v2183
    %2306 = vmatprep.subr.bf16.mxu0 0
    %2307 = vmatpush1.bf16.msra.mxu0 %v2182
    %2308 = vmatprep.subr.bf16.mxu0 0
    %2309 = vmatpush1.bf16.msra.mxu0 %v2181
    %2310 = vmatprep.subr.bf16.mxu0 0
    %2311 = vmatpush1.bf16.msra.mxu0 %v2180
    %2312 = vmatprep.subr.bf16.mxu0 0
    %2313 = vmatpush1.bf16.msra.mxu0 %v2179
    %2314 = vmatprep.subr.bf16.mxu0 0
    %2315 = vmatpush1.bf16.msra.mxu0 %v2178
    %2316 = vmatprep.subr.bf16.mxu0 0
    %2317 = vmatpush1.bf16.msra.mxu0 %v2177
    %2318 = vmatprep.subr.bf16.mxu0 0
    %2319 = vmatpush1.bf16.msra.mxu0 %v2176
    %2320 = vmatprep.subr.bf16.mxu0 0
    %2321 = vmatpush2.bf16.msra.mxu0 0
    %2322 = vmatprep.subr.bf16.mxu0 0
    %2323 = vmatpush2.bf16.msra.mxu0 0
    %2324 = vmatprep.subr.bf16.mxu0 0
    %2325 = vmatpush2.bf16.msra.mxu0 0
    %2326 = vmatprep.subr.bf16.mxu0 0
    %2327 = vmatpush2.bf16.msra.mxu0 0
    %2328 = vmatprep.subr.bf16.mxu0 0
    %2329 = vmatpush2.bf16.msra.mxu0 0
    %2330 = vmatprep.subr.bf16.mxu0 0
    %2331 = vmatpush2.bf16.msra.mxu0 0
    %2332 = vmatprep.subr.bf16.mxu0 0
    %2333 = vmatpush2.bf16.msra.mxu0 0
    %2334 = vmatprep.subr.bf16.mxu0 0
    %2335 = vmatpush2.bf16.msra.mxu0 0
    %2336 = vmatprep.mubr.bf16.mxu0 0
    %2337 = vmatmul.mubr.bf16.gmra.mxu0 %v1896
    %v2338 = vpop.f32.mrf.mxu0
    %v2339 = vadd.f32 %v2299, %v2338
    %v2340 = vpop.f32.mrf.mxu0
    %v2341 = vpop.f32.mrf.mxu0
    %v2342 = vpop.f32.mrf.mxu0
    %2343 = vdwg.mxu0
    %2344 = vst [vmem:[#allocation11] sm:$0xff] %v2339
    // Predicated region
    $region50: #{tpu_custom_call.1} parent=1 // pred_check
      _
    $region51: #{tpu_custom_call.1} parent=1 // pred_check_branch
      %2346 = sbr.rel (0) target = $region53
    $region52: #{tpu_custom_call.1} parent=1 // pred_region
      %s2348 = ssub.s32 128, 128
      %2349 = vsyncadd [#allocation4], %s2348
      %s2351 = sshll.u32 [#allocation11], 4
      %s2352 = int_to_ptr.vmem [resolvable:$true] %s2351
      %2354 = dma.vmem_to_hbm [thread:$0]  %s2352, 128, %s7, [#allocation4]
    $region53: #{tpu_custom_call.1} parent=1 // pred_fallthru
      _
    // Predicated region
    $region54: #{tpu_custom_call.1} parent=1 // pred_check
      _
    $region55: #{tpu_custom_call.1} parent=1 // pred_check_branch
      %2356 = sbr.rel (0) target = $region57
    $region56: #{tpu_custom_call.1} parent=1 // pred_region
      %2357 = dma.done [#allocation4], 128
    $region57: #{tpu_custom_call.1} parent=1 // pred_fallthru
      _
    %2358 = vsyncpa [#allocation3], 1
    %2359 = vsyncpa [#allocation6], 1
    %2360 = vsyncpa [#allocation9], 1
    %2361 = vsyncpa [#allocation4], 1

</llo_original>
